<compile_context>
chip_gen: v6e
topology: v6e:2x2x1
jax: 0.10.0
libtpu: 0.0.40
codegen_flags: <defaults>
</compile_context>

<pallas_src>
import jax
import jax.numpy as jnp
from jax.experimental import pallas as pl
from jax.experimental.pallas import tpu as pltpu


def residual_block_kernel(x_ref, wb1_ref, s1_ref, b1_ref, wb2_ref, s2_ref, b2_ref,
                          o_ref, acc_ref):
    """Fused residual block on lane-dense activations.

    x_ref  : (B, H, L)   L = W*C, input activations (W folded into lanes)
    wb*    : (3*L, L)    banded conv weights (kh, w_src, ci) -> (w_dst, co)
    s*/b*  : (1, L)      folded BN scale / bias, tiled per lane
    o_ref  : (B, H, L)   output
    acc_ref: (B, H, L)   f32 VMEM accumulator for the vertically shifted taps
    """
    B, H, L = x_ref.shape

    def conv3x3(src_2d, wb_ref):
        # One MXU matmul per vertical tap kh; horizontal taps / zero padding /
        # channel mix are encoded in the band.  Partial results are combined
        # with a one-row vertical shift accumulated in VMEM — no im2col patch
        # buffer, no row-shifted activation staging stores.
        lhs = src_2d.astype(wb_ref.dtype)
        p0 = jnp.dot(lhs, wb_ref[0 * L:1 * L, :], preferred_element_type=jnp.float32)
        p1 = jnp.dot(lhs, wb_ref[1 * L:2 * L, :], preferred_element_type=jnp.float32)
        p2 = jnp.dot(lhs, wb_ref[2 * L:3 * L, :], preferred_element_type=jnp.float32)
        acc_ref[...] = p1.reshape(B, H, L)
        # out[h] += p0[h-1] (top tap), out[h] += p2[h+1] (bottom tap); the
        # first / last output rows keep implicit zero padding (no add).
        acc_ref[:, 1:H, :] += p0.reshape(B, H, L)[:, 0:H - 1, :]
        acc_ref[:, 0:H - 1, :] += p2.reshape(B, H, L)[:, 1:H, :]
        return acc_ref[...].reshape(B * H, L)

    x2d = x_ref[...].reshape(B * H, L)

    # conv1 -> folded BN1 -> ReLU  (full-width VPU ops on the 128-lane layout)
    y1 = jnp.maximum(conv3x3(x2d, wb1_ref) * s1_ref[...] + b1_ref[...], 0.0)

    # conv2 -> folded BN2 -> + identity shortcut -> ReLU
    z = conv3x3(y1, wb2_ref) * s2_ref[...] + b2_ref[...] + x2d
    o_ref[...] = jnp.maximum(z, 0.0).reshape(B, H, L)


def _band_weight(w_hwio, W):
    """Banded weight matrix for one 3x3 conv.

    WB has shape (3*W*Cin, W*Cout) with
        WB[kh*W*Cin + ws*Cin + ci, wd*Cout + co] = w[kh, ws-wd+1, ci, co]
    for ws - wd in {-1, 0, +1} (zero elsewhere).  Horizontal zero padding is
    implicit because out-of-range source columns simply don't exist.
    """
    KH, KW, Cin, Cout = w_hwio.shape
    ws = jnp.arange(W)[:, None]       # source spatial position
    wd = jnp.arange(W)[None, :]       # destination spatial position
    big = jnp.zeros((KH, W, Cin, W, Cout), w_hwio.dtype)
    for kw in range(KW):
        mask = (ws == wd + (kw - 1)).astype(w_hwio.dtype)     # (W, W)
        big = big + jnp.einsum('sd,hio->hsido', mask, w_hwio[:, kw])
    return big.reshape(KH * W * Cin, W * Cout)


def _vmem_budget_bytes():
    """Generation-aware VMEM budget (with headroom: v7x only has 64 MiB total)."""
    try:
        cap = int(pltpu.get_tpu_info().vmem_capacity_bytes)
    except Exception:
        cap = 64 * 1024 * 1024
    return min(cap // 2, 64 * 1024 * 1024)


def _pick_block_n(N, H, L, mxu_itemsize, budget_bytes):
    """Images per grid step.

    Pick the largest divisor of N that (a) fits the VMEM budget, preferring
    (b) MXU M-fill (B*H >= 128 per matmul) and (c) >= 2 grid steps so
    "parallel" batch steps can shard across v7x's two cores and the BlockSpec
    pipeline can hide x/out DMAs.
    """
    # per-step working set: double-buffered x/out blocks (f32) + MXU lhs copy
    # + f32 temps (partial matmuls, y1) + acc scratch.
    per_img = (4 * 4 + 2 * mxu_itemsize + 6 * 4) * H * L
    # fixed: double-buffered wb1/wb2 blocks + scale/bias blocks.
    fixed = 2 * 2 * 3 * L * L * mxu_itemsize + 8 * L * 4
    divisors = [d for d in range(1, N + 1) if N % d == 0]
    fitting = [d for d in divisors if fixed + d * per_img <= budget_bytes] or [1]
    return max(fitting, key=lambda d: (min(d * H, 128), N // d >= 2, d))


def residual_block(x, w1, bn1, w2, bn2, eps=1e-5, block_n=None,
                   mxu_dtype=jnp.float32):
    """x: (N, H, W, C) NHWC float32.  w*: (3,3,Cin,Cout) HWIO.
    bn* = (gamma, beta, running_mean, running_var).
    mxu_dtype=jnp.bfloat16 uses the native bf16 MXU path (v6e/v7x; ~1e-2 tol)."""
    N, H, W, C = x.shape
    assert w1.shape == (3, 3, C, C) and w2.shape == (3, 3, C, C), \
        "identity shortcut requires inchannel == outchannel, 3x3 kernels, stride 1"
    assert H >= 2
    L = W * C
    assert L <= 2048, "banded-conv formulation intended for small W*C"

    # Fold BN (inference mode) into per-channel scale/bias, tiled across lanes.
    g1, be1, m1, v1 = bn1
    g2, be2, m2, v2 = bn2
    s1 = g1 / jnp.sqrt(v1 + eps)
    b1 = be1 - m1 * s1
    s2 = g2 / jnp.sqrt(v2 + eps)
    b2 = be2 - m2 * s2
    s1l = jnp.tile(s1, W).reshape(1, L)
    b1l = jnp.tile(b1, W).reshape(1, L)
    s2l = jnp.tile(s2, W).reshape(1, L)
    b2l = jnp.tile(b2, W).reshape(1, L)

    # Banded conv weights: three (L, L) MXU operands per conv, stacked as (3L, L).
    wb1 = _band_weight(w1, W).astype(mxu_dtype)
    wb2 = _band_weight(w2, W).astype(mxu_dtype)

    # Lane-dense activations (free reshape: last two dims are contiguous).
    xl = x.reshape(N, H, L)

    budget = _vmem_budget_bytes()
    if block_n is None:
        block_n = _pick_block_n(N, H, L, jnp.dtype(mxu_dtype).itemsize, budget)
    B = block_n
    assert N % B == 0

    out = pl.pallas_call(
        residual_block_kernel,
        out_shape=jax.ShapeDtypeStruct((N, H, L), jnp.float32),
        grid_spec=pltpu.PrefetchScalarGridSpec(
            num_scalar_prefetch=0,
            grid=(N // B,),
            in_specs=[
                pl.BlockSpec((B, H, L), lambda n: (n, 0, 0)),
                pl.BlockSpec((3 * L, L), lambda n: (0, 0)),
                pl.BlockSpec((1, L), lambda n: (0, 0)),
                pl.BlockSpec((1, L), lambda n: (0, 0)),
                pl.BlockSpec((3 * L, L), lambda n: (0, 0)),
                pl.BlockSpec((1, L), lambda n: (0, 0)),
                pl.BlockSpec((1, L), lambda n: (0, 0)),
            ],
            out_specs=pl.BlockSpec((B, H, L), lambda n: (n, 0, 0)),
            scratch_shapes=[pltpu.VMEM((B, H, L), jnp.float32)],
        ),
        compiler_params=pltpu.CompilerParams(
            dimension_semantics=("parallel",),     # batch steps are independent
            vmem_limit_bytes=budget),
    )(xl, wb1, s1l, b1l, wb2, s2l, b2l)

    return out.reshape(N, H, W, C)


def reference_forward(x, w1, bn1, w2, bn2, eps=1e-5):
    """Pure-JAX reference (same semantics as the PyTorch module in eval mode, NHWC)."""
    dn = ("NHWC", "HWIO", "NHWC")
    g1, be1, m1, v1 = bn1
    g2, be2, m2, v2 = bn2
    y = jax.lax.conv_general_dilated(x, w1, (1, 1), "SAME", dimension_numbers=dn)
    y = (y - m1) / jnp.sqrt(v1 + eps) * g1 + be1
    y = jnp.maximum(y, 0.0)
    z = jax.lax.conv_general_dilated(y, w2, (1, 1), "SAME", dimension_numbers=dn)
    z = (z - m2) / jnp.sqrt(v2 + eps) * g2 + be2
    return jnp.maximum(z + x, 0.0)


if __name__ == "__main__":
    # Shapes consistent with ResidualBlock(inchannel=8, outchannel=8, stride=1).
    # W*C = 128 makes the lane-dense layout exactly one vreg wide; N=16 lets
    # the heuristic pick block_n=8 -> two grid steps with M = B*H = 128 per
    # matmul (MXU-filling, and shardable across v7x's two TensorCores).
    N, H, W, C = 16, 16, 16, 8

    key = jax.random.PRNGKey(0)
    keys = jax.random.split(key, 11)

    x = jax.random.normal(keys[0], (N, H, W, C), jnp.float32)

    # Conv weights (HWIO), deterministic init.
    w1 = jax.random.normal(keys[1], (3, 3, C, C), jnp.float32) * 0.1
    w2 = jax.random.normal(keys[2], (3, 3, C, C), jnp.float32) * 0.1

    # BatchNorm params (gamma, beta, running_mean, running_var).
    bn1 = (1.0 + 0.1 * jax.random.normal(keys[3], (C,), jnp.float32),
           0.1 * jax.random.normal(keys[4], (C,), jnp.float32),
           0.1 * jax.random.normal(keys[5], (C,), jnp.float32),
           0.5 + jnp.abs(jax.random.normal(keys[6], (C,), jnp.float32)))
    bn2 = (1.0 + 0.1 * jax.random.normal(keys[7], (C,), jnp.float32),
           0.1 * jax.random.normal(keys[8], (C,), jnp.float32),
           0.1 * jax.random.normal(keys[9], (C,), jnp.float32),
           0.5 + jnp.abs(jax.random.normal(keys[10], (C,), jnp.float32)))

    out = residual_block(x, w1, bn1, w2, bn2)
    out = jax.block_until_ready(out)

    ref = jax.block_until_ready(reference_forward(x, w1, bn1, w2, bn2))
    assert out.shape == (N, H, W, C)
    assert jnp.allclose(out, ref, atol=5e-4, rtol=5e-4), "mismatch vs reference"

    print("KERNEL_OK")
</pallas_src>

<mosaic_0001>
module attributes {stable_mosaic.version = 11 : i64} {
  func.func @residual_block_kernel(%arg0: i32, %arg1: memref<8x16x128xf32, #tpu.memory_space<vmem>>, %arg2: memref<384x128xf32, #tpu.memory_space<vmem>>, %arg3: memref<1x128xf32, #tpu.memory_space<vmem>>, %arg4: memref<1x128xf32, #tpu.memory_space<vmem>>, %arg5: memref<384x128xf32, #tpu.memory_space<vmem>>, %arg6: memref<1x128xf32, #tpu.memory_space<vmem>>, %arg7: memref<1x128xf32, #tpu.memory_space<vmem>>, %arg8: memref<8x16x128xf32, #tpu.memory_space<vmem>>, %arg9: memref<8x16x128xf32, #tpu.memory_space<vmem>>) attributes {dimension_semantics = [#tpu.dimension_semantics<parallel>], iteration_bounds = array<i64: 2>, scalar_prefetch = 0 : i64, scratch_operands = 1 : i64, tpu.core_type = #tpu.core_type<tc>, window_params = [{transform_indices = @transform_0, window_bounds = array<i64: 8, 16, 128>}, {pipeline_mode = #tpu.pipeline_mode<synchronous>, transform_indices = @transform_1, window_bounds = array<i64: 384, 128>}, {pipeline_mode = #tpu.pipeline_mode<synchronous>, transform_indices = @transform_2, window_bounds = array<i64: 1, 128>}, {pipeline_mode = #tpu.pipeline_mode<synchronous>, transform_indices = @transform_3, window_bounds = array<i64: 1, 128>}, {pipeline_mode = #tpu.pipeline_mode<synchronous>, transform_indices = @transform_4, window_bounds = array<i64: 384, 128>}, {pipeline_mode = #tpu.pipeline_mode<synchronous>, transform_indices = @transform_5, window_bounds = array<i64: 1, 128>}, {pipeline_mode = #tpu.pipeline_mode<synchronous>, transform_indices = @transform_6, window_bounds = array<i64: 1, 128>}, {transform_indices = @transform_7, window_bounds = array<i64: 8, 16, 128>}]} {
    %c0 = arith.constant 0 : index
    %c0_0 = arith.constant 0 : index
    %c0_1 = arith.constant 0 : index
    %0 = vector.load %arg1[%c0, %c0_0, %c0_1] : memref<8x16x128xf32, #tpu.memory_space<vmem>>, vector<8x16x128xf32>
    %1 = vector.shape_cast %0 : vector<8x16x128xf32> to vector<128x128xf32>
    %c0_2 = arith.constant 0 : index
    %c0_3 = arith.constant 0 : index
    %2 = vector.load %arg2[%c0_2, %c0_3] : memref<384x128xf32, #tpu.memory_space<vmem>>, vector<128x128xf32>
    %cst = arith.constant dense<0.000000e+00> : vector<128x128xf32>
    %3 = tpu.matmul %1, %2, %cst {dimension_numbers = #tpu.dot_dimension_numbers<[1], [0], [0], [1], [0, 0, 1, 1], [], []>} : vector<128x128xf32>, vector<128x128xf32>, vector<128x128xf32> -> vector<128x128xf32>
    %c128 = arith.constant 128 : index
    %c0_4 = arith.constant 0 : index
    %4 = vector.load %arg2[%c128, %c0_4] : memref<384x128xf32, #tpu.memory_space<vmem>>, vector<128x128xf32>
    %cst_5 = arith.constant dense<0.000000e+00> : vector<128x128xf32>
    %5 = tpu.matmul %1, %4, %cst_5 {dimension_numbers = #tpu.dot_dimension_numbers<[1], [0], [0], [1], [0, 0, 1, 1], [], []>} : vector<128x128xf32>, vector<128x128xf32>, vector<128x128xf32> -> vector<128x128xf32>
    %c256 = arith.constant 256 : index
    %c0_6 = arith.constant 0 : index
    %6 = vector.load %arg2[%c256, %c0_6] : memref<384x128xf32, #tpu.memory_space<vmem>>, vector<128x128xf32>
    %cst_7 = arith.constant dense<0.000000e+00> : vector<128x128xf32>
    %7 = tpu.matmul %1, %6, %cst_7 {dimension_numbers = #tpu.dot_dimension_numbers<[1], [0], [0], [1], [0, 0, 1, 1], [], []>} : vector<128x128xf32>, vector<128x128xf32>, vector<128x128xf32> -> vector<128x128xf32>
    %8 = vector.shape_cast %5 : vector<128x128xf32> to vector<8x16x128xf32>
    %c0_8 = arith.constant 0 : index
    %c0_9 = arith.constant 0 : index
    %c0_10 = arith.constant 0 : index
    %9 = vector.load %arg9[%c0_8, %c0_9, %c0_10] : memref<8x16x128xf32, #tpu.memory_space<vmem>>, vector<8x16x128xf32>
    tpu.vector_store %arg9[%c0_8, %c0_9, %c0_10], %8 {strides = array<i32>} : memref<8x16x128xf32, #tpu.memory_space<vmem>>, vector<8x16x128xf32>,
    %c0_11 = arith.constant 0 : index
    %c1 = arith.constant 1 : index
    %c0_12 = arith.constant 0 : index
    %10 = vector.load %arg9[%c0_11, %c1, %c0_12] : memref<8x16x128xf32, #tpu.memory_space<vmem>>, vector<8x15x128xf32>
    %11 = vector.shape_cast %3 : vector<128x128xf32> to vector<8x16x128xf32>
    %12 = vector.extract_strided_slice %11 {offsets = [0, 0, 0], sizes = [8, 15, 128], strides = [1, 1, 1]} : vector<8x16x128xf32> to vector<8x15x128xf32>
    %13 = arith.addf %10, %12 : vector<8x15x128xf32>
    %c0_13 = arith.constant 0 : index
    %c1_14 = arith.constant 1 : index
    %c0_15 = arith.constant 0 : index
    %14 = vector.load %arg9[%c0_13, %c1_14, %c0_15] : memref<8x16x128xf32, #tpu.memory_space<vmem>>, vector<8x15x128xf32>
    tpu.vector_store %arg9[%c0_13, %c1_14, %c0_15], %13 {strides = array<i32>} : memref<8x16x128xf32, #tpu.memory_space<vmem>>, vector<8x15x128xf32>,
    %c0_16 = arith.constant 0 : index
    %c0_17 = arith.constant 0 : index
    %c0_18 = arith.constant 0 : index
    %15 = vector.load %arg9[%c0_16, %c0_17, %c0_18] : memref<8x16x128xf32, #tpu.memory_space<vmem>>, vector<8x15x128xf32>
    %16 = vector.shape_cast %7 : vector<128x128xf32> to vector<8x16x128xf32>
    %17 = vector.extract_strided_slice %16 {offsets = [0, 1, 0], sizes = [8, 15, 128], strides = [1, 1, 1]} : vector<8x16x128xf32> to vector<8x15x128xf32>
    %18 = arith.addf %15, %17 : vector<8x15x128xf32>
    %c0_19 = arith.constant 0 : index
    %c0_20 = arith.constant 0 : index
    %c0_21 = arith.constant 0 : index
    %19 = vector.load %arg9[%c0_19, %c0_20, %c0_21] : memref<8x16x128xf32, #tpu.memory_space<vmem>>, vector<8x15x128xf32>
    tpu.vector_store %arg9[%c0_19, %c0_20, %c0_21], %18 {strides = array<i32>} : memref<8x16x128xf32, #tpu.memory_space<vmem>>, vector<8x15x128xf32>,
    %c0_22 = arith.constant 0 : index
    %c0_23 = arith.constant 0 : index
    %c0_24 = arith.constant 0 : index
    %20 = vector.load %arg9[%c0_22, %c0_23, %c0_24] : memref<8x16x128xf32, #tpu.memory_space<vmem>>, vector<8x16x128xf32>
    %21 = vector.shape_cast %20 : vector<8x16x128xf32> to vector<128x128xf32>
    %c0_25 = arith.constant 0 : index
    %c0_26 = arith.constant 0 : index
    %22 = vector.load %arg3[%c0_25, %c0_26] : memref<1x128xf32, #tpu.memory_space<vmem>>, vector<1x128xf32>
    %23 = vector.broadcast %22 : vector<1x128xf32> to vector<128x128xf32>
    %24 = arith.mulf %21, %23 : vector<128x128xf32>
    %c0_27 = arith.constant 0 : index
    %c0_28 = arith.constant 0 : index
    %25 = vector.load %arg4[%c0_27, %c0_28] : memref<1x128xf32, #tpu.memory_space<vmem>>, vector<1x128xf32>
    %26 = vector.broadcast %25 : vector<1x128xf32> to vector<128x128xf32>
    %27 = arith.addf %24, %26 : vector<128x128xf32>
    %cst_29 = arith.constant 0.000000e+00 : f32
    %28 = vector.broadcast %cst_29 : f32 to vector<128x128xf32>
    %29 = arith.maximumf %27, %28 : vector<128x128xf32>
    %c0_30 = arith.constant 0 : index
    %c0_31 = arith.constant 0 : index
    %30 = vector.load %arg5[%c0_30, %c0_31] : memref<384x128xf32, #tpu.memory_space<vmem>>, vector<128x128xf32>
    %cst_32 = arith.constant dense<0.000000e+00> : vector<128x128xf32>
    %31 = tpu.matmul %29, %30, %cst_32 {dimension_numbers = #tpu.dot_dimension_numbers<[1], [0], [0], [1], [0, 0, 1, 1], [], []>} : vector<128x128xf32>, vector<128x128xf32>, vector<128x128xf32> -> vector<128x128xf32>
    %c128_33 = arith.constant 128 : index
    %c0_34 = arith.constant 0 : index
    %32 = vector.load %arg5[%c128_33, %c0_34] : memref<384x128xf32, #tpu.memory_space<vmem>>, vector<128x128xf32>
    %cst_35 = arith.constant dense<0.000000e+00> : vector<128x128xf32>
    %33 = tpu.matmul %29, %32, %cst_35 {dimension_numbers = #tpu.dot_dimension_numbers<[1], [0], [0], [1], [0, 0, 1, 1], [], []>} : vector<128x128xf32>, vector<128x128xf32>, vector<128x128xf32> -> vector<128x128xf32>
    %c256_36 = arith.constant 256 : index
    %c0_37 = arith.constant 0 : index
    %34 = vector.load %arg5[%c256_36, %c0_37] : memref<384x128xf32, #tpu.memory_space<vmem>>, vector<128x128xf32>
    %cst_38 = arith.constant dense<0.000000e+00> : vector<128x128xf32>
    %35 = tpu.matmul %29, %34, %cst_38 {dimension_numbers = #tpu.dot_dimension_numbers<[1], [0], [0], [1], [0, 0, 1, 1], [], []>} : vector<128x128xf32>, vector<128x128xf32>, vector<128x128xf32> -> vector<128x128xf32>
    %36 = vector.shape_cast %33 : vector<128x128xf32> to vector<8x16x128xf32>
    %c0_39 = arith.constant 0 : index
    %c0_40 = arith.constant 0 : index
    %c0_41 = arith.constant 0 : index
    %37 = vector.load %arg9[%c0_39, %c0_40, %c0_41] : memref<8x16x128xf32, #tpu.memory_space<vmem>>, vector<8x16x128xf32>
    tpu.vector_store %arg9[%c0_39, %c0_40, %c0_41], %36 {strides = array<i32>} : memref<8x16x128xf32, #tpu.memory_space<vmem>>, vector<8x16x128xf32>,
    %c0_42 = arith.constant 0 : index
    %c1_43 = arith.constant 1 : index
    %c0_44 = arith.constant 0 : index
    %38 = vector.load %arg9[%c0_42, %c1_43, %c0_44] : memref<8x16x128xf32, #tpu.memory_space<vmem>>, vector<8x15x128xf32>
    %39 = vector.shape_cast %31 : vector<128x128xf32> to vector<8x16x128xf32>
    %40 = vector.extract_strided_slice %39 {offsets = [0, 0, 0], sizes = [8, 15, 128], strides = [1, 1, 1]} : vector<8x16x128xf32> to vector<8x15x128xf32>
    %41 = arith.addf %38, %40 : vector<8x15x128xf32>
    %c0_45 = arith.constant 0 : index
    %c1_46 = arith.constant 1 : index
    %c0_47 = arith.constant 0 : index
    %42 = vector.load %arg9[%c0_45, %c1_46, %c0_47] : memref<8x16x128xf32, #tpu.memory_space<vmem>>, vector<8x15x128xf32>
    tpu.vector_store %arg9[%c0_45, %c1_46, %c0_47], %41 {strides = array<i32>} : memref<8x16x128xf32, #tpu.memory_space<vmem>>, vector<8x15x128xf32>,
    %c0_48 = arith.constant 0 : index
    %c0_49 = arith.constant 0 : index
    %c0_50 = arith.constant 0 : index
    %43 = vector.load %arg9[%c0_48, %c0_49, %c0_50] : memref<8x16x128xf32, #tpu.memory_space<vmem>>, vector<8x15x128xf32>
    %44 = vector.shape_cast %35 : vector<128x128xf32> to vector<8x16x128xf32>
    %45 = vector.extract_strided_slice %44 {offsets = [0, 1, 0], sizes = [8, 15, 128], strides = [1, 1, 1]} : vector<8x16x128xf32> to vector<8x15x128xf32>
    %46 = arith.addf %43, %45 : vector<8x15x128xf32>
    %c0_51 = arith.constant 0 : index
    %c0_52 = arith.constant 0 : index
    %c0_53 = arith.constant 0 : index
    %47 = vector.load %arg9[%c0_51, %c0_52, %c0_53] : memref<8x16x128xf32, #tpu.memory_space<vmem>>, vector<8x15x128xf32>
    tpu.vector_store %arg9[%c0_51, %c0_52, %c0_53], %46 {strides = array<i32>} : memref<8x16x128xf32, #tpu.memory_space<vmem>>, vector<8x15x128xf32>,
    %c0_54 = arith.constant 0 : index
    %c0_55 = arith.constant 0 : index
    %c0_56 = arith.constant 0 : index
    %48 = vector.load %arg9[%c0_54, %c0_55, %c0_56] : memref<8x16x128xf32, #tpu.memory_space<vmem>>, vector<8x16x128xf32>
    %49 = vector.shape_cast %48 : vector<8x16x128xf32> to vector<128x128xf32>
    %c0_57 = arith.constant 0 : index
    %c0_58 = arith.constant 0 : index
    %50 = vector.load %arg6[%c0_57, %c0_58] : memref<1x128xf32, #tpu.memory_space<vmem>>, vector<1x128xf32>
    %51 = vector.broadcast %50 : vector<1x128xf32> to vector<128x128xf32>
    %52 = arith.mulf %49, %51 : vector<128x128xf32>
    %c0_59 = arith.constant 0 : index
    %c0_60 = arith.constant 0 : index
    %53 = vector.load %arg7[%c0_59, %c0_60] : memref<1x128xf32, #tpu.memory_space<vmem>>, vector<1x128xf32>
    %54 = vector.broadcast %53 : vector<1x128xf32> to vector<128x128xf32>
    %55 = arith.addf %52, %54 : vector<128x128xf32>
    %56 = arith.addf %55, %1 : vector<128x128xf32>
    %cst_61 = arith.constant 0.000000e+00 : f32
    %57 = vector.broadcast %cst_61 : f32 to vector<128x128xf32>
    %58 = arith.maximumf %56, %57 : vector<128x128xf32>
    %59 = vector.shape_cast %58 : vector<128x128xf32> to vector<8x16x128xf32>
    %c0_62 = arith.constant 0 : index
    %c0_63 = arith.constant 0 : index
    %c0_64 = arith.constant 0 : index
    %60 = vector.load %arg8[%c0_62, %c0_63, %c0_64] : memref<8x16x128xf32, #tpu.memory_space<vmem>>, vector<8x16x128xf32>
    tpu.vector_store %arg8[%c0_62, %c0_63, %c0_64], %59 {strides = array<i32>} : memref<8x16x128xf32, #tpu.memory_space<vmem>>, vector<8x16x128xf32>,
    return
  }
  func.func @transform_0(%arg0: i32) -> (i32, i32, i32) {
    %c0_i32 = arith.constant 0 : i32
    %c0_i32_0 = arith.constant 0 : i32
    %c0_i32_1 = arith.constant 0 : i32
    return %arg0, %c0_i32, %c0_i32_0 : i32, i32, i32
  }
  func.func @transform_1(%arg0: i32) -> (i32, i32) {
    %c0_i32 = arith.constant 0 : i32
    %c0_i32_0 = arith.constant 0 : i32
    %c0_i32_1 = arith.constant 0 : i32
    return %c0_i32, %c0_i32_0 : i32, i32
  }
  func.func @transform_2(%arg0: i32) -> (i32, i32) {
    %c0_i32 = arith.constant 0 : i32
    %c0_i32_0 = arith.constant 0 : i32
    %c0_i32_1 = arith.constant 0 : i32
    return %c0_i32, %c0_i32_0 : i32, i32
  }
  func.func @transform_3(%arg0: i32) -> (i32, i32) {
    %c0_i32 = arith.constant 0 : i32
    %c0_i32_0 = arith.constant 0 : i32
    %c0_i32_1 = arith.constant 0 : i32
    return %c0_i32, %c0_i32_0 : i32, i32
  }
  func.func @transform_4(%arg0: i32) -> (i32, i32) {
    %c0_i32 = arith.constant 0 : i32
    %c0_i32_0 = arith.constant 0 : i32
    %c0_i32_1 = arith.constant 0 : i32
    return %c0_i32, %c0_i32_0 : i32, i32
  }
  func.func @transform_5(%arg0: i32) -> (i32, i32) {
    %c0_i32 = arith.constant 0 : i32
    %c0_i32_0 = arith.constant 0 : i32
    %c0_i32_1 = arith.constant 0 : i32
    return %c0_i32, %c0_i32_0 : i32, i32
  }
  func.func @transform_6(%arg0: i32) -> (i32, i32) {
    %c0_i32 = arith.constant 0 : i32
    %c0_i32_0 = arith.constant 0 : i32
    %c0_i32_1 = arith.constant 0 : i32
    return %c0_i32, %c0_i32_0 : i32, i32
  }
  func.func @transform_7(%arg0: i32) -> (i32, i32, i32) {
    %c0_i32 = arith.constant 0 : i32
    %c0_i32_0 = arith.constant 0 : i32
    %c0_i32_1 = arith.constant 0 : i32
    return %arg0, %c0_i32, %c0_i32_0 : i32, i32, i32
  }
}

</mosaic_0001>

<llo_original>
// kernel: tpu_custom_call.1
$region0: #{tpu_custom_call.1}
  #allocation0 [shape = 'u32[]', space=smem, size = 0x4, offset = 0x4, fixed_abs, tag = 'smem constant byte address 0x4 - core index']
  #allocation1 [shape = 'u32[144,128]{1,0:T(1,128)}', space=vmem, size = 0x12000, scoped, tag = 'internal scratch']
  #allocation2 [shape = 'f32[8,16,128]{2,1,0:T(8,128)}', space=vmem, size = 0x10000, scoped, tag = 'scratch operand']
  %s0 = inlined_call_operand.hbm [shape: f32[16,16,128], index: 0, kind: input, shape index: {}]
  %s1 = inlined_call_operand.hbm [shape: f32[384,128], index: 1, kind: input, shape index: {}]
  %s2 = inlined_call_operand.vmem [shape: f32[1,128], index: 2, kind: input, shape index: {}]
  %s3 = inlined_call_operand.vmem [shape: f32[1,128], index: 3, kind: input, shape index: {}]
  %s4 = inlined_call_operand.hbm [shape: f32[384,128], index: 4, kind: input, shape index: {}]
  %s5 = inlined_call_operand.vmem [shape: f32[1,128], index: 5, kind: input, shape index: {}]
  %s6 = inlined_call_operand.vmem [shape: f32[1,128], index: 6, kind: input, shape index: {}]
  %s7 = inlined_call_operand.hbm [shape: f32[16,16,128], index: 7, kind: output, shape index: {}]
  %s8 = sld [smem:[#allocation0]]
  $region73: #{tpu_custom_call.1} parent=0
    _
  %s10 = ssub.s32 1, %s8
  %s11 = scalar_select 0, %s10, %s8
  $region1: #{tpu_custom_call.1} parent=0
    #allocation3 [shape = 'u8[131072]{0}', space=vmem, size = 0x20000, scoped, tag = 'input window, operand 0']
    #allocation4 [shape = 's32[2]{0}', space=sflag, size = 0x8, scoped, tag = 'scoped memory for tpu_custom_call.1']
    #allocation5 [shape = 's32[2]{0}', space=sflag, size = 0x8, scoped, tag = 'scoped memory for tpu_custom_call.1']
    #allocation6 [shape = 'u8[196608]{0}', space=vmem, size = 0x30000, scoped, tag = 'input window, operand 1, single buffered']
    #allocation7 [shape = 's32[1]{0}', space=sflag, size = 0x4, scoped, tag = 'scoped memory for tpu_custom_call.1']
    #allocation8 [shape = 'u8[196608]{0}', space=vmem, size = 0x30000, scoped, tag = 'input window, operand 4, single buffered']
    #allocation9 [shape = 'u8[131072]{0}', space=vmem, size = 0x20000, scoped, tag = 'output window, operand 0']
    %12 = vsyncpa [#allocation4], 0
    %s13 = scalar_lea.sflag [#allocation4], 1
    %14 = vsyncpa %s13, 0
    %15 = vsyncpa [#allocation7], 0
    %16 = vsyncpa [#allocation5], 0
    %s17 = scalar_lea.sflag [#allocation5], 1
    %18 = vsyncpa %s17, 0
    loop: start=0, step=1, limit=4
    $region2: #{tpu_custom_call.1} parent=1 // loop_pre_header
      _
    $region3: #{tpu_custom_call.1} parent=1 // loop_header
      %s20 = sphi 0, %s24
      %p21 = scmp.ge.s32.totalorder %s20, 4
      %s30 = sphi 0, %s32
      %s33 = sphi 0, %s30
      %s34 = sphi 0, %s33
      %s50 = sphi 0, %s34
      %s54 = sphi 0, %s54
      %s56 = sphi 0, %s54
      %s57 = sphi 0, %s56
      %s71 = sphi 0, %s57
      %s75 = sphi 0, %s75
      %s77 = sphi 0, %s75
      %s78 = sphi 0, %s77
      %s92 = sphi 0, %s78
      %s96 = sphi 0, %s96
      %s98 = sphi 0, %s96
      %s99 = sphi 0, %s98
      %s113 = sphi 0, %s99
      %s117 = sphi 0, %s117
      %s119 = sphi 0, %s117
      %s120 = sphi 0, %s119
      %s134 = sphi 0, %s120
      %s138 = sphi 0, %s138
      %s140 = sphi 0, %s138
      %s141 = sphi 0, %s140
      %s155 = sphi 0, %s141
      %s159 = sphi 0, %s159
      %s161 = sphi 0, %s159
      %s162 = sphi 0, %s161
      %s176 = sphi 0, %s162
      %s182 = sphi 0, %s184
      %s185 = sphi 0, %s182
      %s186 = sphi 0, %s185
      %s202 = sphi 0, %s186
    $region4: #{tpu_custom_call.1} parent=1 // loop_header_branch
      %23 = sbr.rel (%p21) target = $region8
    $region5: #{tpu_custom_call.1} parent=1 // loop_body
      %s25 = ssub.s32 %s20, 1
      %s26 = ssub.s32 %s20, 2
      %s27 = sadd.s32 %s20, 1
      %s28 = ssub.s32 %s20, %s27
      %p29 = scmp.eq.s32.totalorder %s28, 0
      %s31 = sadd.s32 %s30, 1
      %s32 = scalar_select %p29, %s30, %s31
      %p35 = pneg %p29
      %p36 = scmp.eq.s32.totalorder %s20, 1
      %p37 = por %p35, %p36
      %p38 = scmp.ne.s32.totalorder %s30, %s33
      %p39 = scmp.eq.s32.totalorder %s20, 0
      %p40 = por %p38, %p39
      %p41 = scmp.ne.s32.totalorder %s30, %s33
      %p42 = scmp.eq.s32.totalorder %s25, 1
      %p43 = por %p41, %p42
      %p44 = scmp.ne.s32.totalorder %s33, %s34
      %p45 = scmp.eq.s32.totalorder %s25, 0
      %p46 = por %p44, %p45
      %p47 = scmp.ne.s32.totalorder %s33, %s34
      %p48 = scmp.eq.s32.totalorder %s26, 1
      %p49 = por %p47, %p48
      %p51 = scmp.ne.s32.totalorder %s34, %s50
      %p52 = scmp.eq.s32.totalorder %s26, 0
      %p53 = por %p51, %p52
      %s55 = sadd.s32 %s54, 1
      %p58 = scmp.eq.s32.totalorder %s20, 1
      %p59 = scmp.ne.s32.totalorder %s54, %s56
      %p60 = scmp.eq.s32.totalorder %s20, 0
      %p61 = por %p59, %p60
      %p62 = scmp.ne.s32.totalorder %s54, %s56
      %p63 = scmp.eq.s32.totalorder %s25, 1
      %p64 = por %p62, %p63
      %p65 = scmp.ne.s32.totalorder %s56, %s57
      %p66 = scmp.eq.s32.totalorder %s25, 0
      %p67 = por %p65, %p66
      %p68 = scmp.ne.s32.totalorder %s56, %s57
      %p69 = scmp.eq.s32.totalorder %s26, 1
      %p70 = por %p68, %p69
      %p72 = scmp.ne.s32.totalorder %s57, %s71
      %p73 = scmp.eq.s32.totalorder %s26, 0
      %p74 = por %p72, %p73
      %s76 = sadd.s32 %s75, 1
      %p79 = scmp.eq.s32.totalorder %s20, 1
      %p80 = scmp.ne.s32.totalorder %s75, %s77
      %p81 = scmp.eq.s32.totalorder %s20, 0
      %p82 = por %p80, %p81
      %p83 = scmp.ne.s32.totalorder %s75, %s77
      %p84 = scmp.eq.s32.totalorder %s25, 1
      %p85 = por %p83, %p84
      %p86 = scmp.ne.s32.totalorder %s77, %s78
      %p87 = scmp.eq.s32.totalorder %s25, 0
      %p88 = por %p86, %p87
      %p89 = scmp.ne.s32.totalorder %s77, %s78
      %p90 = scmp.eq.s32.totalorder %s26, 1
      %p91 = por %p89, %p90
      %p93 = scmp.ne.s32.totalorder %s78, %s92
      %p94 = scmp.eq.s32.totalorder %s26, 0
      %p95 = por %p93, %p94
      %s97 = sadd.s32 %s96, 1
      %p100 = scmp.eq.s32.totalorder %s20, 1
      %p101 = scmp.ne.s32.totalorder %s96, %s98
      %p102 = scmp.eq.s32.totalorder %s20, 0
      %p103 = por %p101, %p102
      %p104 = scmp.ne.s32.totalorder %s96, %s98
      %p105 = scmp.eq.s32.totalorder %s25, 1
      %p106 = por %p104, %p105
      %p107 = scmp.ne.s32.totalorder %s98, %s99
      %p108 = scmp.eq.s32.totalorder %s25, 0
      %p109 = por %p107, %p108
      %p110 = scmp.ne.s32.totalorder %s98, %s99
      %p111 = scmp.eq.s32.totalorder %s26, 1
      %p112 = por %p110, %p111
      %p114 = scmp.ne.s32.totalorder %s99, %s113
      %p115 = scmp.eq.s32.totalorder %s26, 0
      %p116 = por %p114, %p115
      %s118 = sadd.s32 %s117, 1
      %p121 = scmp.eq.s32.totalorder %s20, 1
      %p122 = scmp.ne.s32.totalorder %s117, %s119
      %p123 = scmp.eq.s32.totalorder %s20, 0
      %p124 = por %p122, %p123
      %p125 = scmp.ne.s32.totalorder %s117, %s119
      %p126 = scmp.eq.s32.totalorder %s25, 1
      %p127 = por %p125, %p126
      %p128 = scmp.ne.s32.totalorder %s119, %s120
      %p129 = scmp.eq.s32.totalorder %s25, 0
      %p130 = por %p128, %p129
      %p131 = scmp.ne.s32.totalorder %s119, %s120
      %p132 = scmp.eq.s32.totalorder %s26, 1
      %p133 = por %p131, %p132
      %p135 = scmp.ne.s32.totalorder %s120, %s134
      %p136 = scmp.eq.s32.totalorder %s26, 0
      %p137 = por %p135, %p136
      %s139 = sadd.s32 %s138, 1
      %p142 = scmp.eq.s32.totalorder %s20, 1
      %p143 = scmp.ne.s32.totalorder %s138, %s140
      %p144 = scmp.eq.s32.totalorder %s20, 0
      %p145 = por %p143, %p144
      %p146 = scmp.ne.s32.totalorder %s138, %s140
      %p147 = scmp.eq.s32.totalorder %s25, 1
      %p148 = por %p146, %p147
      %p149 = scmp.ne.s32.totalorder %s140, %s141
      %p150 = scmp.eq.s32.totalorder %s25, 0
      %p151 = por %p149, %p150
      %p152 = scmp.ne.s32.totalorder %s140, %s141
      %p153 = scmp.eq.s32.totalorder %s26, 1
      %p154 = por %p152, %p153
      %p156 = scmp.ne.s32.totalorder %s141, %s155
      %p157 = scmp.eq.s32.totalorder %s26, 0
      %p158 = por %p156, %p157
      %s160 = sadd.s32 %s159, 1
      %p163 = scmp.eq.s32.totalorder %s20, 1
      %p164 = scmp.ne.s32.totalorder %s159, %s161
      %p165 = scmp.eq.s32.totalorder %s20, 0
      %p166 = por %p164, %p165
      %p167 = scmp.ne.s32.totalorder %s159, %s161
      %p168 = scmp.eq.s32.totalorder %s25, 1
      %p169 = por %p167, %p168
      %p170 = scmp.ne.s32.totalorder %s161, %s162
      %p171 = scmp.eq.s32.totalorder %s25, 0
      %p172 = por %p170, %p171
      %p173 = scmp.ne.s32.totalorder %s161, %s162
      %p174 = scmp.eq.s32.totalorder %s26, 1
      %p175 = por %p173, %p174
      %p177 = scmp.ne.s32.totalorder %s162, %s176
      %p178 = scmp.eq.s32.totalorder %s26, 0
      %p179 = por %p177, %p178
      %s180 = ssub.s32 %s20, %s27
      %p181 = scmp.eq.s32.totalorder %s180, 0
      %s183 = sadd.s32 %s182, 1
      %s184 = scalar_select %p181, %s182, %s183
      %p187 = pneg %p181
      %p188 = scmp.eq.s32.totalorder %s20, 1
      %p189 = por %p187, %p188
      %p190 = scmp.ne.s32.totalorder %s182, %s185
      %p191 = scmp.eq.s32.totalorder %s20, 0
      %p192 = por %p190, %p191
      %p193 = scmp.ne.s32.totalorder %s182, %s185
      %p194 = scmp.eq.s32.totalorder %s25, 1
      %p195 = por %p193, %p194
      %p196 = scmp.ne.s32.totalorder %s185, %s186
      %p197 = scmp.eq.s32.totalorder %s25, 0
      %p198 = por %p196, %p197
      %p199 = scmp.ne.s32.totalorder %s185, %s186
      %p200 = scmp.eq.s32.totalorder %s26, 1
      %p201 = por %p199, %p200
      %p203 = scmp.ne.s32.totalorder %s186, %s202
      %p204 = scmp.eq.s32.totalorder %s26, 0
      %p205 = por %p203, %p204
      %p206 = scmp.le.s32.totalorder 1, %s20
      %p207 = scmp.lt.s32.totalorder %s20, 3
      %p208 = pnand %p206, %p207
      %p209 = pneg %p208
      // Predicated region
      $region9: #{tpu_custom_call.1} parent=5 // pred_check
        _
      $region10: #{tpu_custom_call.1} parent=5 // pred_check_branch
        %211 = sbr.rel (%p208) target = $region12
      $region11: #{tpu_custom_call.1} parent=5 // pred_region
        %s212 = ssub.s32 %s20, 1
        // Predicated region
        $region13: #{tpu_custom_call.1} parent=11 // pred_check
          %p213 = pneg %p67
        $region14: #{tpu_custom_call.1} parent=11 // pred_check_branch
          %215 = sbr.rel (%p213) target = $region16
        $region15: #{tpu_custom_call.1} parent=11 // pred_region
          %s217 = ssub.s32 6144, 6144
          %218 = vsyncadd [#allocation7], %s217
          %s219 = sshll.u32 [#allocation6], 4
          %s220 = int_to_ptr.vmem [resolvable:$true] %s219
          %225 = dma.hbm_to_vmem [thread:$0]  %s1, 6144, %s220, [#allocation7], 128, 128, 8
        $region16: #{tpu_custom_call.1} parent=11 // pred_fallthru
          _
        // Predicated region
        $region17: #{tpu_custom_call.1} parent=11 // pred_check
          %p226 = pneg %p88
        $region18: #{tpu_custom_call.1} parent=11 // pred_check_branch
          %228 = sbr.rel (%p226) target = $region20
        $region19: #{tpu_custom_call.1} parent=11 // pred_region
          _
        $region20: #{tpu_custom_call.1} parent=11 // pred_fallthru
          _
        // Predicated region
        $region21: #{tpu_custom_call.1} parent=11 // pred_check
          %p229 = pneg %p109
        $region22: #{tpu_custom_call.1} parent=11 // pred_check_branch
          %231 = sbr.rel (%p229) target = $region24
        $region23: #{tpu_custom_call.1} parent=11 // pred_region
          _
        $region24: #{tpu_custom_call.1} parent=11 // pred_fallthru
          _
        // Predicated region
        $region25: #{tpu_custom_call.1} parent=11 // pred_check
          %p232 = pneg %p130
        $region26: #{tpu_custom_call.1} parent=11 // pred_check_branch
          %234 = sbr.rel (%p232) target = $region28
        $region27: #{tpu_custom_call.1} parent=11 // pred_region
          %s236 = ssub.s32 6144, 6144
          %237 = vsyncadd [#allocation7], %s236
          %s238 = sshll.u32 [#allocation8], 4
          %s239 = int_to_ptr.vmem [resolvable:$true] %s238
          %244 = dma.hbm_to_vmem [thread:$0]  %s4, 6144, %s239, [#allocation7], 128, 128, 8
        $region28: #{tpu_custom_call.1} parent=11 // pred_fallthru
          _
        // Predicated region
        $region29: #{tpu_custom_call.1} parent=11 // pred_check
          %p245 = pneg %p151
        $region30: #{tpu_custom_call.1} parent=11 // pred_check_branch
          %247 = sbr.rel (%p245) target = $region32
        $region31: #{tpu_custom_call.1} parent=11 // pred_region
          _
        $region32: #{tpu_custom_call.1} parent=11 // pred_fallthru
          _
        // Predicated region
        $region33: #{tpu_custom_call.1} parent=11 // pred_check
          %p248 = pneg %p172
        $region34: #{tpu_custom_call.1} parent=11 // pred_check_branch
          %250 = sbr.rel (%p248) target = $region36
        $region35: #{tpu_custom_call.1} parent=11 // pred_region
          _
        $region36: #{tpu_custom_call.1} parent=11 // pred_fallthru
          _
      $region12: #{tpu_custom_call.1} parent=5 // pred_fallthru
        _
      %p251 = scmp.lt.s32.totalorder %s20, 2
      // Predicated region
      $region37: #{tpu_custom_call.1} parent=5 // pred_check
        %p252 = pneg %p251
      $region38: #{tpu_custom_call.1} parent=5 // pred_check_branch
        %254 = sbr.rel (%p252) target = $region40
      $region39: #{tpu_custom_call.1} parent=5 // pred_region
        // Predicated region
        $region41: #{tpu_custom_call.1} parent=39 // pred_check
          %p255 = pneg %p40
        $region42: #{tpu_custom_call.1} parent=39 // pred_check_branch
          %257 = sbr.rel (%p255) target = $region44
        $region43: #{tpu_custom_call.1} parent=39 // pred_region
          %s258 = sand.u32 %s30, 1
          %s259 = scalar_lea.sflag [#allocation4], %s258
          %s260 = sand.u32 %s30, 1
          %s261 = smul.addr %s260, 128
          %s262 = scalar_lea.vmem [#allocation3], %s261
          %s263 = smul.u32 8, %s20
          %s265 = ssub.s32 2048, 2048
          %266 = vsyncadd %s259, %s265
          %s267 = smul.addr %s263, 2
          %s268 = smul.addr %s267, 128
          %s269 = scalar_lea.hbm %s0, %s268
          %s270 = sshll.u32 %s262, 4
          %s271 = int_to_ptr.vmem [resolvable:$true] %s270
          %276 = dma.hbm_to_vmem [thread:$0]  %s269, 2048, %s271, %s259, 128, 128, 8
        $region44: #{tpu_custom_call.1} parent=39 // pred_fallthru
          _
      $region40: #{tpu_custom_call.1} parent=5 // pred_fallthru
        _
      %p277 = scmp.le.s32.totalorder 1, %s20
      %p278 = scmp.lt.s32.totalorder %s20, 3
      %p279 = pnand %p277, %p278
      %p280 = pneg %p279
      // Predicated region
      $region45: #{tpu_custom_call.1} parent=5 // pred_check
        _
      $region46: #{tpu_custom_call.1} parent=5 // pred_check_branch
        %282 = sbr.rel (%p279) target = $region48
      $region47: #{tpu_custom_call.1} parent=5 // pred_region
        %s283 = ssub.s32 %s20, 1
        %s284 = sand.u32 %s33, 1
        %s285 = scalar_lea.sflag [#allocation4], %s284
        %s286 = sand.u32 %s33, 1
        %s287 = smul.addr %s286, 128
        %s288 = scalar_lea.vmem [#allocation3], %s287
        // Predicated region
        $region49: #{tpu_custom_call.1} parent=47 // pred_check
          %p289 = pneg %p46
        $region50: #{tpu_custom_call.1} parent=47 // pred_check_branch
          %291 = sbr.rel (%p289) target = $region52
        $region51: #{tpu_custom_call.1} parent=47 // pred_region
          %292 = dma.done %s285, 2048
        $region52: #{tpu_custom_call.1} parent=47 // pred_fallthru
          _
        // Predicated region
        $region53: #{tpu_custom_call.1} parent=47 // pred_check
          %p293 = pneg %p67
        $region54: #{tpu_custom_call.1} parent=47 // pred_check_branch
          %295 = sbr.rel (%p293) target = $region56
        $region55: #{tpu_custom_call.1} parent=47 // pred_region
          %296 = dma.done [#allocation7], 6144
        $region56: #{tpu_custom_call.1} parent=47 // pred_fallthru
          _
        // Predicated region
        $region57: #{tpu_custom_call.1} parent=47 // pred_check
          %p297 = pneg %p130
        $region58: #{tpu_custom_call.1} parent=47 // pred_check_branch
          %299 = sbr.rel (%p297) target = $region60
        $region59: #{tpu_custom_call.1} parent=47 // pred_region
          %300 = dma.done [#allocation7], 6144
        $region60: #{tpu_custom_call.1} parent=47 // pred_fallthru
          _
        %s301 = sand.u32 %s33, 1
        %s302 = scalar_lea.sflag [#allocation4], %s301
        %s303 = sand.u32 %s33, 1
        %s304 = smul.addr %s303, 128
        %s305 = scalar_lea.vmem [#allocation3], %s304
        %p306 = pneg %p46
        %p307 = pneg %p43
        %p308 = pneg %p67
        %p309 = pneg %p64
        %p310 = pneg %p88
        %p311 = pneg %p85
        %p312 = pneg %p109
        %p313 = pneg %p106
        %p314 = pneg %p130
        %p315 = pneg %p127
        %p316 = pneg %p151
        %p317 = pneg %p148
        %p318 = pneg %p172
        %p319 = pneg %p169
        %p320 = pneg %p198
        %p321 = pneg %p195
        %s322 = sand.u32 %s185, 1
        %s323 = scalar_lea.sflag [#allocation5], %s322
        %s324 = sand.u32 %s185, 1
        %s325 = smul.addr %s324, 128
        %s326 = scalar_lea.vmem [#allocation9], %s325
        %s327 = smul.u32 8, %s25
        %s328 = smul.u32 8, %s25
        %v329 = vld [vmem:[%s288] sm:$0xff]
        %v330 = vld [vmem:[%s288 + $0x8] sm:$0xff]
        %v331 = vld [vmem:[%s288 + $0x10] sm:$0xff]
        %v332 = vld [vmem:[%s288 + $0x18] sm:$0xff]
        %v333 = vld [vmem:[%s288 + $0x20] sm:$0xff]
        %v334 = vld [vmem:[%s288 + $0x28] sm:$0xff]
        %v335 = vld [vmem:[%s288 + $0x30] sm:$0xff]
        %v336 = vld [vmem:[%s288 + $0x38] sm:$0xff]
        %v337 = vld [vmem:[%s288 + $0x40] sm:$0xff]
        %v338 = vld [vmem:[%s288 + $0x48] sm:$0xff]
        %v339 = vld [vmem:[%s288 + $0x50] sm:$0xff]
        %v340 = vld [vmem:[%s288 + $0x58] sm:$0xff]
        %v341 = vld [vmem:[%s288 + $0x60] sm:$0xff]
        %v342 = vld [vmem:[%s288 + $0x68] sm:$0xff]
        %v343 = vld [vmem:[%s288 + $0x70] sm:$0xff]
        %v344 = vld [vmem:[%s288 + $0x78] sm:$0xff]
        %v345 = vld [vmem:[#allocation6] sm:$0xff]
        %v346 = vld [vmem:[#allocation6 + $0x8] sm:$0xff]
        %v347 = vld [vmem:[#allocation6 + $0x10] sm:$0xff]
        %v348 = vld [vmem:[#allocation6 + $0x18] sm:$0xff]
        %v349 = vld [vmem:[#allocation6 + $0x20] sm:$0xff]
        %v350 = vld [vmem:[#allocation6 + $0x28] sm:$0xff]
        %v351 = vld [vmem:[#allocation6 + $0x30] sm:$0xff]
        %v352 = vld [vmem:[#allocation6 + $0x38] sm:$0xff]
        %v353 = vld [vmem:[#allocation6 + $0x40] sm:$0xff]
        %v354 = vld [vmem:[#allocation6 + $0x48] sm:$0xff]
        %v355 = vld [vmem:[#allocation6 + $0x50] sm:$0xff]
        %v356 = vld [vmem:[#allocation6 + $0x58] sm:$0xff]
        %v357 = vld [vmem:[#allocation6 + $0x60] sm:$0xff]
        %v358 = vld [vmem:[#allocation6 + $0x68] sm:$0xff]
        %v359 = vld [vmem:[#allocation6 + $0x70] sm:$0xff]
        %v360 = vld [vmem:[#allocation6 + $0x78] sm:$0xff]
        %361 = vmatprep.subr.mxu0 0.0
        %362 = vmatpush1.msra.mxu0 %v360
        %363 = vmatprep.subr.mxu0 0.0
        %364 = vmatpush1.msra.mxu0 %v359
        %365 = vmatprep.subr.mxu0 0.0
        %366 = vmatpush1.msra.mxu0 %v358
        %367 = vmatprep.subr.mxu0 0.0
        %368 = vmatpush1.msra.mxu0 %v357
        %369 = vmatprep.subr.mxu0 0.0
        %370 = vmatpush1.msra.mxu0 %v356
        %371 = vmatprep.subr.mxu0 0.0
        %372 = vmatpush1.msra.mxu0 %v355
        %373 = vmatprep.subr.mxu0 0.0
        %374 = vmatpush1.msra.mxu0 %v354
        %375 = vmatprep.subr.mxu0 0.0
        %376 = vmatpush1.msra.mxu0 %v353
        %377 = vmatprep.subr.mxu0 0.0
        %378 = vmatpush1.msra.mxu0 %v352
        %379 = vmatprep.subr.mxu0 0.0
        %380 = vmatpush1.msra.mxu0 %v351
        %381 = vmatprep.subr.mxu0 0.0
        %382 = vmatpush1.msra.mxu0 %v350
        %383 = vmatprep.subr.mxu0 0.0
        %384 = vmatpush1.msra.mxu0 %v349
        %385 = vmatprep.subr.mxu0 0.0
        %386 = vmatpush1.msra.mxu0 %v348
        %387 = vmatprep.subr.mxu0 0.0
        %388 = vmatpush1.msra.mxu0 %v347
        %389 = vmatprep.subr.mxu0 0.0
        %390 = vmatpush1.msra.mxu0 %v346
        %391 = vmatprep.subr.mxu0 0.0
        %392 = vmatpush1.msra.mxu0 %v345
        %393 = vmatprep.subr.mxu0 0.0
        %394 = vmatpush2.msra.mxu0 0.0
        %395 = vmatprep.subr.mxu0 0.0
        %396 = vmatpush2.msra.mxu0 0.0
        %397 = vmatprep.subr.mxu0 0.0
        %398 = vmatpush2.msra.mxu0 0.0
        %399 = vmatprep.subr.mxu0 0.0
        %400 = vmatpush2.msra.mxu0 0.0
        %401 = vmatprep.subr.mxu0 0.0
        %402 = vmatpush2.msra.mxu0 0.0
        %403 = vmatprep.subr.mxu0 0.0
        %404 = vmatpush2.msra.mxu0 0.0
        %405 = vmatprep.subr.mxu0 0.0
        %406 = vmatpush2.msra.mxu0 0.0
        %407 = vmatprep.subr.mxu0 0.0
        %408 = vmatpush2.msra.mxu0 0.0
        %409 = vmatprep.subr.mxu0 0.0
        %410 = vmatpush2.msra.mxu0 0.0
        %411 = vmatprep.subr.mxu0 0.0
        %412 = vmatpush2.msra.mxu0 0.0
        %413 = vmatprep.subr.mxu0 0.0
        %414 = vmatpush2.msra.mxu0 0.0
        %415 = vmatprep.subr.mxu0 0.0
        %416 = vmatpush2.msra.mxu0 0.0
        %417 = vmatprep.subr.mxu0 0.0
        %418 = vmatpush2.msra.mxu0 0.0
        %419 = vmatprep.subr.mxu0 0.0
        %420 = vmatpush2.msra.mxu0 0.0
        %421 = vmatprep.subr.mxu0 0.0
        %422 = vmatpush2.msra.mxu0 0.0
        %423 = vmatprep.subr.mxu0 0.0
        %424 = vmatpush2.msra.mxu0 0.0
        %425 = vmatprep.mubr.f32.mxu0 0.0
        %426 = vmatmul.mubr.f32.gmra.mxu0 %v329
        %v427 = vpop.f32.mrf.mxu0
        %v428 = vadd.f32 0.0, %v427
        %v429 = vpop.f32.mrf.mxu0
        %430 = vmatprep.mubr.f32.mxu0 0.0
        %431 = vmatmul.mubr.f32.gmra.mxu0 %v330
        %v432 = vpop.f32.mrf.mxu0
        %v433 = vadd.f32 0.0, %v432
        %v434 = vpop.f32.mrf.mxu0
        %435 = vmatprep.mubr.f32.mxu0 0.0
        %436 = vmatmul.mubr.f32.gmra.mxu0 %v331
        %v437 = vpop.f32.mrf.mxu0
        %v438 = vadd.f32 0.0, %v437
        %v439 = vpop.f32.mrf.mxu0
        %440 = vmatprep.mubr.f32.mxu0 0.0
        %441 = vmatmul.mubr.f32.gmra.mxu0 %v332
        %v442 = vpop.f32.mrf.mxu0
        %v443 = vadd.f32 0.0, %v442
        %v444 = vpop.f32.mrf.mxu0
        %445 = vmatprep.mubr.f32.mxu0 0.0
        %446 = vmatmul.mubr.f32.gmra.mxu0 %v333
        %v447 = vpop.f32.mrf.mxu0
        %v448 = vadd.f32 0.0, %v447
        %v449 = vpop.f32.mrf.mxu0
        %450 = vmatprep.mubr.f32.mxu0 0.0
        %451 = vmatmul.mubr.f32.gmra.mxu0 %v334
        %v452 = vpop.f32.mrf.mxu0
        %v453 = vadd.f32 0.0, %v452
        %v454 = vpop.f32.mrf.mxu0
        %455 = vmatprep.mubr.f32.mxu0 0.0
        %456 = vmatmul.mubr.f32.gmra.mxu0 %v335
        %v457 = vpop.f32.mrf.mxu0
        %v458 = vadd.f32 0.0, %v457
        %v459 = vpop.f32.mrf.mxu0
        %460 = vmatprep.mubr.f32.mxu0 0.0
        %461 = vmatmul.mubr.f32.gmra.mxu0 %v336
        %v462 = vpop.f32.mrf.mxu0
        %v463 = vadd.f32 0.0, %v462
        %v464 = vpop.f32.mrf.mxu0
        %465 = vmatprep.mubr.f32.mxu0 0.0
        %466 = vmatmul.mubr.f32.gmra.mxu0 %v337
        %v467 = vpop.f32.mrf.mxu0
        %v468 = vadd.f32 0.0, %v467
        %v469 = vpop.f32.mrf.mxu0
        %470 = vmatprep.mubr.f32.mxu0 0.0
        %471 = vmatmul.mubr.f32.gmra.mxu0 %v338
        %v472 = vpop.f32.mrf.mxu0
        %v473 = vadd.f32 0.0, %v472
        %v474 = vpop.f32.mrf.mxu0
        %475 = vmatprep.mubr.f32.mxu0 0.0
        %476 = vmatmul.mubr.f32.gmra.mxu0 %v339
        %v477 = vpop.f32.mrf.mxu0
        %v478 = vadd.f32 0.0, %v477
        %v479 = vpop.f32.mrf.mxu0
        %480 = vmatprep.mubr.f32.mxu0 0.0
        %481 = vmatmul.mubr.f32.gmra.mxu0 %v340
        %v482 = vpop.f32.mrf.mxu0
        %v483 = vadd.f32 0.0, %v482
        %v484 = vpop.f32.mrf.mxu0
        %485 = vmatprep.mubr.f32.mxu0 0.0
        %486 = vmatmul.mubr.f32.gmra.mxu0 %v341
        %v487 = vpop.f32.mrf.mxu0
        %v488 = vadd.f32 0.0, %v487
        %v489 = vpop.f32.mrf.mxu0
        %490 = vmatprep.mubr.f32.mxu0 0.0
        %491 = vmatmul.mubr.f32.gmra.mxu0 %v342
        %v492 = vpop.f32.mrf.mxu0
        %v493 = vadd.f32 0.0, %v492
        %v494 = vpop.f32.mrf.mxu0
        %495 = vmatprep.mubr.f32.mxu0 0.0
        %496 = vmatmul.mubr.f32.gmra.mxu0 %v343
        %v497 = vpop.f32.mrf.mxu0
        %v498 = vadd.f32 0.0, %v497
        %v499 = vpop.f32.mrf.mxu0
        %500 = vmatprep.mubr.f32.mxu0 0.0
        %501 = vmatmul.mubr.f32.gmra.mxu0 %v344
        %v502 = vpop.f32.mrf.mxu0
        %v503 = vadd.f32 0.0, %v502
        %v504 = vpop.f32.mrf.mxu0
        %505 = vdwg.mxu0
        %v506 = vld [vmem:[#allocation6 + $0x80] sm:$0xff]
        %v507 = vld [vmem:[#allocation6 + $0x88] sm:$0xff]
        %v508 = vld [vmem:[#allocation6 + $0x90] sm:$0xff]
        %v509 = vld [vmem:[#allocation6 + $0x98] sm:$0xff]
        %v510 = vld [vmem:[#allocation6 + $0xa0] sm:$0xff]
        %v511 = vld [vmem:[#allocation6 + $0xa8] sm:$0xff]
        %v512 = vld [vmem:[#allocation6 + $0xb0] sm:$0xff]
        %v513 = vld [vmem:[#allocation6 + $0xb8] sm:$0xff]
        %v514 = vld [vmem:[#allocation6 + $0xc0] sm:$0xff]
        %v515 = vld [vmem:[#allocation6 + $0xc8] sm:$0xff]
        %v516 = vld [vmem:[#allocation6 + $0xd0] sm:$0xff]
        %v517 = vld [vmem:[#allocation6 + $0xd8] sm:$0xff]
        %v518 = vld [vmem:[#allocation6 + $0xe0] sm:$0xff]
        %v519 = vld [vmem:[#allocation6 + $0xe8] sm:$0xff]
        %v520 = vld [vmem:[#allocation6 + $0xf0] sm:$0xff]
        %v521 = vld [vmem:[#allocation6 + $0xf8] sm:$0xff]
        %522 = vmatprep.subr.mxu0 0.0
        %523 = vmatpush1.msra.mxu0 %v521
        %524 = vmatprep.subr.mxu0 0.0
        %525 = vmatpush1.msra.mxu0 %v520
        %526 = vmatprep.subr.mxu0 0.0
        %527 = vmatpush1.msra.mxu0 %v519
        %528 = vmatprep.subr.mxu0 0.0
        %529 = vmatpush1.msra.mxu0 %v518
        %530 = vmatprep.subr.mxu0 0.0
        %531 = vmatpush1.msra.mxu0 %v517
        %532 = vmatprep.subr.mxu0 0.0
        %533 = vmatpush1.msra.mxu0 %v516
        %534 = vmatprep.subr.mxu0 0.0
        %535 = vmatpush1.msra.mxu0 %v515
        %536 = vmatprep.subr.mxu0 0.0
        %537 = vmatpush1.msra.mxu0 %v514
        %538 = vmatprep.subr.mxu0 0.0
        %539 = vmatpush1.msra.mxu0 %v513
        %540 = vmatprep.subr.mxu0 0.0
        %541 = vmatpush1.msra.mxu0 %v512
        %542 = vmatprep.subr.mxu0 0.0
        %543 = vmatpush1.msra.mxu0 %v511
        %544 = vmatprep.subr.mxu0 0.0
        %545 = vmatpush1.msra.mxu0 %v510
        %546 = vmatprep.subr.mxu0 0.0
        %547 = vmatpush1.msra.mxu0 %v509
        %548 = vmatprep.subr.mxu0 0.0
        %549 = vmatpush1.msra.mxu0 %v508
        %550 = vmatprep.subr.mxu0 0.0
        %551 = vmatpush1.msra.mxu0 %v507
        %552 = vmatprep.subr.mxu0 0.0
        %553 = vmatpush1.msra.mxu0 %v506
        %554 = vmatprep.subr.mxu0 0.0
        %555 = vmatpush2.msra.mxu0 0.0
        %556 = vmatprep.subr.mxu0 0.0
        %557 = vmatpush2.msra.mxu0 0.0
        %558 = vmatprep.subr.mxu0 0.0
        %559 = vmatpush2.msra.mxu0 0.0
        %560 = vmatprep.subr.mxu0 0.0
        %561 = vmatpush2.msra.mxu0 0.0
        %562 = vmatprep.subr.mxu0 0.0
        %563 = vmatpush2.msra.mxu0 0.0
        %564 = vmatprep.subr.mxu0 0.0
        %565 = vmatpush2.msra.mxu0 0.0
        %566 = vmatprep.subr.mxu0 0.0
        %567 = vmatpush2.msra.mxu0 0.0
        %568 = vmatprep.subr.mxu0 0.0
        %569 = vmatpush2.msra.mxu0 0.0
        %570 = vmatprep.subr.mxu0 0.0
        %571 = vmatpush2.msra.mxu0 0.0
        %572 = vmatprep.subr.mxu0 0.0
        %573 = vmatpush2.msra.mxu0 0.0
        %574 = vmatprep.subr.mxu0 0.0
        %575 = vmatpush2.msra.mxu0 0.0
        %576 = vmatprep.subr.mxu0 0.0
        %577 = vmatpush2.msra.mxu0 0.0
        %578 = vmatprep.subr.mxu0 0.0
        %579 = vmatpush2.msra.mxu0 0.0
        %580 = vmatprep.subr.mxu0 0.0
        %581 = vmatpush2.msra.mxu0 0.0
        %582 = vmatprep.subr.mxu0 0.0
        %583 = vmatpush2.msra.mxu0 0.0
        %584 = vmatprep.subr.mxu0 0.0
        %585 = vmatpush2.msra.mxu0 0.0
        %586 = vmatprep.mubr.f32.mxu0 0.0
        %587 = vmatmul.mubr.f32.gmra.mxu0 %v329
        %v588 = vpop.f32.mrf.mxu0
        %v589 = vadd.f32 0.0, %v588
        %v590 = vpop.f32.mrf.mxu0
        %591 = vmatprep.mubr.f32.mxu0 0.0
        %592 = vmatmul.mubr.f32.gmra.mxu0 %v330
        %v593 = vpop.f32.mrf.mxu0
        %v594 = vadd.f32 0.0, %v593
        %v595 = vpop.f32.mrf.mxu0
        %596 = vmatprep.mubr.f32.mxu0 0.0
        %597 = vmatmul.mubr.f32.gmra.mxu0 %v331
        %v598 = vpop.f32.mrf.mxu0
        %v599 = vadd.f32 0.0, %v598
        %v600 = vpop.f32.mrf.mxu0
        %601 = vmatprep.mubr.f32.mxu0 0.0
        %602 = vmatmul.mubr.f32.gmra.mxu0 %v332
        %v603 = vpop.f32.mrf.mxu0
        %v604 = vadd.f32 0.0, %v603
        %v605 = vpop.f32.mrf.mxu0
        %606 = vmatprep.mubr.f32.mxu0 0.0
        %607 = vmatmul.mubr.f32.gmra.mxu0 %v333
        %v608 = vpop.f32.mrf.mxu0
        %v609 = vadd.f32 0.0, %v608
        %v610 = vpop.f32.mrf.mxu0
        %611 = vmatprep.mubr.f32.mxu0 0.0
        %612 = vmatmul.mubr.f32.gmra.mxu0 %v334
        %v613 = vpop.f32.mrf.mxu0
        %v614 = vadd.f32 0.0, %v613
        %v615 = vpop.f32.mrf.mxu0
        %616 = vmatprep.mubr.f32.mxu0 0.0
        %617 = vmatmul.mubr.f32.gmra.mxu0 %v335
        %v618 = vpop.f32.mrf.mxu0
        %v619 = vadd.f32 0.0, %v618
        %v620 = vpop.f32.mrf.mxu0
        %621 = vmatprep.mubr.f32.mxu0 0.0
        %622 = vmatmul.mubr.f32.gmra.mxu0 %v336
        %v623 = vpop.f32.mrf.mxu0
        %v624 = vadd.f32 0.0, %v623
        %v625 = vpop.f32.mrf.mxu0
        %626 = vmatprep.mubr.f32.mxu0 0.0
        %627 = vmatmul.mubr.f32.gmra.mxu0 %v337
        %v628 = vpop.f32.mrf.mxu0
        %v629 = vadd.f32 0.0, %v628
        %v630 = vpop.f32.mrf.mxu0
        %631 = vmatprep.mubr.f32.mxu0 0.0
        %632 = vmatmul.mubr.f32.gmra.mxu0 %v338
        %v633 = vpop.f32.mrf.mxu0
        %v634 = vadd.f32 0.0, %v633
        %v635 = vpop.f32.mrf.mxu0
        %636 = vmatprep.mubr.f32.mxu0 0.0
        %637 = vmatmul.mubr.f32.gmra.mxu0 %v339
        %v638 = vpop.f32.mrf.mxu0
        %v639 = vadd.f32 0.0, %v638
        %v640 = vpop.f32.mrf.mxu0
        %641 = vmatprep.mubr.f32.mxu0 0.0
        %642 = vmatmul.mubr.f32.gmra.mxu0 %v340
        %v643 = vpop.f32.mrf.mxu0
        %v644 = vadd.f32 0.0, %v643
        %v645 = vpop.f32.mrf.mxu0
        %646 = vmatprep.mubr.f32.mxu0 0.0
        %647 = vmatmul.mubr.f32.gmra.mxu0 %v341
        %v648 = vpop.f32.mrf.mxu0
        %v649 = vadd.f32 0.0, %v648
        %v650 = vpop.f32.mrf.mxu0
        %651 = vmatprep.mubr.f32.mxu0 0.0
        %652 = vmatmul.mubr.f32.gmra.mxu0 %v342
        %v653 = vpop.f32.mrf.mxu0
        %v654 = vadd.f32 0.0, %v653
        %v655 = vpop.f32.mrf.mxu0
        %656 = vmatprep.mubr.f32.mxu0 0.0
        %657 = vmatmul.mubr.f32.gmra.mxu0 %v343
        %v658 = vpop.f32.mrf.mxu0
        %v659 = vadd.f32 0.0, %v658
        %v660 = vpop.f32.mrf.mxu0
        %661 = vmatprep.mubr.f32.mxu0 0.0
        %662 = vmatmul.mubr.f32.gmra.mxu0 %v344
        %v663 = vpop.f32.mrf.mxu0
        %v664 = vadd.f32 0.0, %v663
        %v665 = vpop.f32.mrf.mxu0
        %666 = vdwg.mxu0
        %v667 = vld [vmem:[#allocation6 + $0x100] sm:$0xff]
        %v668 = vld [vmem:[#allocation6 + $0x108] sm:$0xff]
        %v669 = vld [vmem:[#allocation6 + $0x110] sm:$0xff]
        %v670 = vld [vmem:[#allocation6 + $0x118] sm:$0xff]
        %v671 = vld [vmem:[#allocation6 + $0x120] sm:$0xff]
        %v672 = vld [vmem:[#allocation6 + $0x128] sm:$0xff]
        %v673 = vld [vmem:[#allocation6 + $0x130] sm:$0xff]
        %v674 = vld [vmem:[#allocation6 + $0x138] sm:$0xff]
        %v675 = vld [vmem:[#allocation6 + $0x140] sm:$0xff]
        %v676 = vld [vmem:[#allocation6 + $0x148] sm:$0xff]
        %v677 = vld [vmem:[#allocation6 + $0x150] sm:$0xff]
        %v678 = vld [vmem:[#allocation6 + $0x158] sm:$0xff]
        %v679 = vld [vmem:[#allocation6 + $0x160] sm:$0xff]
        %v680 = vld [vmem:[#allocation6 + $0x168] sm:$0xff]
        %v681 = vld [vmem:[#allocation6 + $0x170] sm:$0xff]
        %v682 = vld [vmem:[#allocation6 + $0x178] sm:$0xff]
        %683 = vmatprep.subr.mxu0 0.0
        %684 = vmatpush1.msra.mxu0 %v682
        %685 = vmatprep.subr.mxu0 0.0
        %686 = vmatpush1.msra.mxu0 %v681
        %687 = vmatprep.subr.mxu0 0.0
        %688 = vmatpush1.msra.mxu0 %v680
        %689 = vmatprep.subr.mxu0 0.0
        %690 = vmatpush1.msra.mxu0 %v679
        %691 = vmatprep.subr.mxu0 0.0
        %692 = vmatpush1.msra.mxu0 %v678
        %693 = vmatprep.subr.mxu0 0.0
        %694 = vmatpush1.msra.mxu0 %v677
        %695 = vmatprep.subr.mxu0 0.0
        %696 = vmatpush1.msra.mxu0 %v676
        %697 = vmatprep.subr.mxu0 0.0
        %698 = vmatpush1.msra.mxu0 %v675
        %699 = vmatprep.subr.mxu0 0.0
        %700 = vmatpush1.msra.mxu0 %v674
        %701 = vmatprep.subr.mxu0 0.0
        %702 = vmatpush1.msra.mxu0 %v673
        %703 = vmatprep.subr.mxu0 0.0
        %704 = vmatpush1.msra.mxu0 %v672
        %705 = vmatprep.subr.mxu0 0.0
        %706 = vmatpush1.msra.mxu0 %v671
        %707 = vmatprep.subr.mxu0 0.0
        %708 = vmatpush1.msra.mxu0 %v670
        %709 = vmatprep.subr.mxu0 0.0
        %710 = vmatpush1.msra.mxu0 %v669
        %711 = vmatprep.subr.mxu0 0.0
        %712 = vmatpush1.msra.mxu0 %v668
        %713 = vmatprep.subr.mxu0 0.0
        %714 = vmatpush1.msra.mxu0 %v667
        %715 = vmatprep.subr.mxu0 0.0
        %716 = vmatpush2.msra.mxu0 0.0
        %717 = vmatprep.subr.mxu0 0.0
        %718 = vmatpush2.msra.mxu0 0.0
        %719 = vmatprep.subr.mxu0 0.0
        %720 = vmatpush2.msra.mxu0 0.0
        %721 = vmatprep.subr.mxu0 0.0
        %722 = vmatpush2.msra.mxu0 0.0
        %723 = vmatprep.subr.mxu0 0.0
        %724 = vmatpush2.msra.mxu0 0.0
        %725 = vmatprep.subr.mxu0 0.0
        %726 = vmatpush2.msra.mxu0 0.0
        %727 = vmatprep.subr.mxu0 0.0
        %728 = vmatpush2.msra.mxu0 0.0
        %729 = vmatprep.subr.mxu0 0.0
        %730 = vmatpush2.msra.mxu0 0.0
        %731 = vmatprep.subr.mxu0 0.0
        %732 = vmatpush2.msra.mxu0 0.0
        %733 = vmatprep.subr.mxu0 0.0
        %734 = vmatpush2.msra.mxu0 0.0
        %735 = vmatprep.subr.mxu0 0.0
        %736 = vmatpush2.msra.mxu0 0.0
        %737 = vmatprep.subr.mxu0 0.0
        %738 = vmatpush2.msra.mxu0 0.0
        %739 = vmatprep.subr.mxu0 0.0
        %740 = vmatpush2.msra.mxu0 0.0
        %741 = vmatprep.subr.mxu0 0.0
        %742 = vmatpush2.msra.mxu0 0.0
        %743 = vmatprep.subr.mxu0 0.0
        %744 = vmatpush2.msra.mxu0 0.0
        %745 = vmatprep.subr.mxu0 0.0
        %746 = vmatpush2.msra.mxu0 0.0
        %747 = vmatprep.mubr.f32.mxu0 0.0
        %748 = vmatmul.mubr.f32.gmra.mxu0 %v329
        %v749 = vpop.f32.mrf.mxu0
        %v750 = vadd.f32 0.0, %v749
        %v751 = vpop.f32.mrf.mxu0
        %752 = vmatprep.mubr.f32.mxu0 0.0
        %753 = vmatmul.mubr.f32.gmra.mxu0 %v330
        %v754 = vpop.f32.mrf.mxu0
        %v755 = vadd.f32 0.0, %v754
        %v756 = vpop.f32.mrf.mxu0
        %757 = vmatprep.mubr.f32.mxu0 0.0
        %758 = vmatmul.mubr.f32.gmra.mxu0 %v331
        %v759 = vpop.f32.mrf.mxu0
        %v760 = vadd.f32 0.0, %v759
        %v761 = vpop.f32.mrf.mxu0
        %762 = vmatprep.mubr.f32.mxu0 0.0
        %763 = vmatmul.mubr.f32.gmra.mxu0 %v332
        %v764 = vpop.f32.mrf.mxu0
        %v765 = vadd.f32 0.0, %v764
        %v766 = vpop.f32.mrf.mxu0
        %767 = vmatprep.mubr.f32.mxu0 0.0
        %768 = vmatmul.mubr.f32.gmra.mxu0 %v333
        %v769 = vpop.f32.mrf.mxu0
        %v770 = vadd.f32 0.0, %v769
        %v771 = vpop.f32.mrf.mxu0
        %772 = vmatprep.mubr.f32.mxu0 0.0
        %773 = vmatmul.mubr.f32.gmra.mxu0 %v334
        %v774 = vpop.f32.mrf.mxu0
        %v775 = vadd.f32 0.0, %v774
        %v776 = vpop.f32.mrf.mxu0
        %777 = vmatprep.mubr.f32.mxu0 0.0
        %778 = vmatmul.mubr.f32.gmra.mxu0 %v335
        %v779 = vpop.f32.mrf.mxu0
        %v780 = vadd.f32 0.0, %v779
        %v781 = vpop.f32.mrf.mxu0
        %782 = vmatprep.mubr.f32.mxu0 0.0
        %783 = vmatmul.mubr.f32.gmra.mxu0 %v336
        %v784 = vpop.f32.mrf.mxu0
        %v785 = vadd.f32 0.0, %v784
        %v786 = vpop.f32.mrf.mxu0
        %787 = vmatprep.mubr.f32.mxu0 0.0
        %788 = vmatmul.mubr.f32.gmra.mxu0 %v337
        %v789 = vpop.f32.mrf.mxu0
        %v790 = vadd.f32 0.0, %v789
        %v791 = vpop.f32.mrf.mxu0
        %792 = vmatprep.mubr.f32.mxu0 0.0
        %793 = vmatmul.mubr.f32.gmra.mxu0 %v338
        %v794 = vpop.f32.mrf.mxu0
        %v795 = vadd.f32 0.0, %v794
        %v796 = vpop.f32.mrf.mxu0
        %797 = vmatprep.mubr.f32.mxu0 0.0
        %798 = vmatmul.mubr.f32.gmra.mxu0 %v339
        %v799 = vpop.f32.mrf.mxu0
        %v800 = vadd.f32 0.0, %v799
        %v801 = vpop.f32.mrf.mxu0
        %802 = vmatprep.mubr.f32.mxu0 0.0
        %803 = vmatmul.mubr.f32.gmra.mxu0 %v340
        %v804 = vpop.f32.mrf.mxu0
        %v805 = vadd.f32 0.0, %v804
        %v806 = vpop.f32.mrf.mxu0
        %807 = vmatprep.mubr.f32.mxu0 0.0
        %808 = vmatmul.mubr.f32.gmra.mxu0 %v341
        %v809 = vpop.f32.mrf.mxu0
        %v810 = vadd.f32 0.0, %v809
        %v811 = vpop.f32.mrf.mxu0
        %812 = vmatprep.mubr.f32.mxu0 0.0
        %813 = vmatmul.mubr.f32.gmra.mxu0 %v342
        %v814 = vpop.f32.mrf.mxu0
        %v815 = vadd.f32 0.0, %v814
        %v816 = vpop.f32.mrf.mxu0
        %817 = vmatprep.mubr.f32.mxu0 0.0
        %818 = vmatmul.mubr.f32.gmra.mxu0 %v343
        %v819 = vpop.f32.mrf.mxu0
        %v820 = vadd.f32 0.0, %v819
        %v821 = vpop.f32.mrf.mxu0
        %822 = vmatprep.mubr.f32.mxu0 0.0
        %823 = vmatmul.mubr.f32.gmra.mxu0 %v344
        %v824 = vpop.f32.mrf.mxu0
        %v825 = vadd.f32 0.0, %v824
        %v826 = vpop.f32.mrf.mxu0
        %827 = vdwg.mxu0
        %828 = vst [vmem:[#allocation2] sm:$0xff] %v589
        %829 = vst [vmem:[#allocation2 + $0x8] sm:$0xff] %v594
        %830 = vst [vmem:[#allocation2 + $0x10] sm:$0xff] %v599
        %831 = vst [vmem:[#allocation2 + $0x18] sm:$0xff] %v604
        %832 = vst [vmem:[#allocation2 + $0x20] sm:$0xff] %v609
        %833 = vst [vmem:[#allocation2 + $0x28] sm:$0xff] %v614
        %834 = vst [vmem:[#allocation2 + $0x30] sm:$0xff] %v619
        %835 = vst [vmem:[#allocation2 + $0x38] sm:$0xff] %v624
        %836 = vst [vmem:[#allocation2 + $0x40] sm:$0xff] %v629
        %837 = vst [vmem:[#allocation2 + $0x48] sm:$0xff] %v634
        %838 = vst [vmem:[#allocation2 + $0x50] sm:$0xff] %v639
        %839 = vst [vmem:[#allocation2 + $0x58] sm:$0xff] %v644
        %840 = vst [vmem:[#allocation2 + $0x60] sm:$0xff] %v649
        %841 = vst [vmem:[#allocation2 + $0x68] sm:$0xff] %v654
        %842 = vst [vmem:[#allocation2 + $0x70] sm:$0xff] %v659
        %843 = vst [vmem:[#allocation2 + $0x78] sm:$0xff] %v664
        %v844 = vld [vmem:[#allocation2 + $0x1] sm:$0xff]
        %v845 = vld [vmem:[#allocation2 + $0x9] sm:$0x7f]
        %v846 = vld [vmem:[#allocation2 + $0x11] sm:$0xff]
        %v847 = vld [vmem:[#allocation2 + $0x19] sm:$0x7f]
        %v848 = vld [vmem:[#allocation2 + $0x21] sm:$0xff]
        %v849 = vld [vmem:[#allocation2 + $0x29] sm:$0x7f]
        %v850 = vld [vmem:[#allocation2 + $0x31] sm:$0xff]
        %v851 = vld [vmem:[#allocation2 + $0x39] sm:$0x7f]
        %v852 = vld [vmem:[#allocation2 + $0x41] sm:$0xff]
        %v853 = vld [vmem:[#allocation2 + $0x49] sm:$0x7f]
        %v854 = vld [vmem:[#allocation2 + $0x51] sm:$0xff]
        %v855 = vld [vmem:[#allocation2 + $0x59] sm:$0x7f]
        %v856 = vld [vmem:[#allocation2 + $0x61] sm:$0xff]
        %v857 = vld [vmem:[#allocation2 + $0x69] sm:$0x7f]
        %v858 = vld [vmem:[#allocation2 + $0x71] sm:$0xff]
        %v859 = vld [vmem:[#allocation2 + $0x79] sm:$0x7f]
        %v860 = vadd.f32 %v844, %v428
        %v861 = vadd.f32 %v845, %v433
        %v862 = vadd.f32 %v846, %v438
        %v863 = vadd.f32 %v847, %v443
        %v864 = vadd.f32 %v848, %v448
        %v865 = vadd.f32 %v849, %v453
        %v866 = vadd.f32 %v850, %v458
        %v867 = vadd.f32 %v851, %v463
        %v868 = vadd.f32 %v852, %v468
        %v869 = vadd.f32 %v853, %v473
        %v870 = vadd.f32 %v854, %v478
        %v871 = vadd.f32 %v855, %v483
        %v872 = vadd.f32 %v856, %v488
        %v873 = vadd.f32 %v857, %v493
        %v874 = vadd.f32 %v858, %v498
        %v875 = vadd.f32 %v859, %v503
        %876 = vst [vmem:[#allocation2 + $0x1] sm:$0xff] %v860
        %877 = vst [vmem:[#allocation2 + $0x9] sm:$0x7f] %v861
        %878 = vst [vmem:[#allocation2 + $0x11] sm:$0xff] %v862
        %879 = vst [vmem:[#allocation2 + $0x19] sm:$0x7f] %v863
        %880 = vst [vmem:[#allocation2 + $0x21] sm:$0xff] %v864
        %881 = vst [vmem:[#allocation2 + $0x29] sm:$0x7f] %v865
        %882 = vst [vmem:[#allocation2 + $0x31] sm:$0xff] %v866
        %883 = vst [vmem:[#allocation2 + $0x39] sm:$0x7f] %v867
        %884 = vst [vmem:[#allocation2 + $0x41] sm:$0xff] %v868
        %885 = vst [vmem:[#allocation2 + $0x49] sm:$0x7f] %v869
        %886 = vst [vmem:[#allocation2 + $0x51] sm:$0xff] %v870
        %887 = vst [vmem:[#allocation2 + $0x59] sm:$0x7f] %v871
        %888 = vst [vmem:[#allocation2 + $0x61] sm:$0xff] %v872
        %889 = vst [vmem:[#allocation2 + $0x69] sm:$0x7f] %v873
        %890 = vst [vmem:[#allocation2 + $0x71] sm:$0xff] %v874
        %891 = vst [vmem:[#allocation2 + $0x79] sm:$0x7f] %v875
        %v892 = vld [vmem:[#allocation2] sm:$0xff]
        %v893 = vld [vmem:[#allocation2 + $0x8] sm:$0x7f]
        %v894 = vld [vmem:[#allocation2 + $0x10] sm:$0xff]
        %v895 = vld [vmem:[#allocation2 + $0x18] sm:$0x7f]
        %v896 = vld [vmem:[#allocation2 + $0x20] sm:$0xff]
        %v897 = vld [vmem:[#allocation2 + $0x28] sm:$0x7f]
        %v898 = vld [vmem:[#allocation2 + $0x30] sm:$0xff]
        %v899 = vld [vmem:[#allocation2 + $0x38] sm:$0x7f]
        %v900 = vld [vmem:[#allocation2 + $0x40] sm:$0xff]
        %v901 = vld [vmem:[#allocation2 + $0x48] sm:$0x7f]
        %v902 = vld [vmem:[#allocation2 + $0x50] sm:$0xff]
        %v903 = vld [vmem:[#allocation2 + $0x58] sm:$0x7f]
        %v904 = vld [vmem:[#allocation2 + $0x60] sm:$0xff]
        %v905 = vld [vmem:[#allocation2 + $0x68] sm:$0x7f]
        %v906 = vld [vmem:[#allocation2 + $0x70] sm:$0xff]
        %v907 = vld [vmem:[#allocation2 + $0x78] sm:$0x7f]
        %vm924 = vcmask 1046528
        %v925 = vrot.slane %v750, 1
        %v926 = vrot.slane %v755, 1
        %v927 = vsel %vm924, %v925, %v926
        %v928 = vrot.slane %v760, 1
        %v929 = vrot.slane %v765, 1
        %v930 = vsel %vm924, %v928, %v929
        %v931 = vrot.slane %v770, 1
        %v932 = vrot.slane %v775, 1
        %v933 = vsel %vm924, %v931, %v932
        %v934 = vrot.slane %v780, 1
        %v935 = vrot.slane %v785, 1
        %v936 = vsel %vm924, %v934, %v935
        %v937 = vrot.slane %v790, 1
        %v938 = vrot.slane %v795, 1
        %v939 = vsel %vm924, %v937, %v938
        %v940 = vrot.slane %v800, 1
        %v941 = vrot.slane %v805, 1
        %v942 = vsel %vm924, %v940, %v941
        %v943 = vrot.slane %v810, 1
        %v944 = vrot.slane %v815, 1
        %v945 = vsel %vm924, %v943, %v944
        %v946 = vrot.slane %v820, 1
        %v947 = vrot.slane %v825, 1
        %v948 = vsel %vm924, %v946, %v947
        %v965 = vadd.f32 %v892, %v927
        %v966 = vadd.f32 %v893, %v926
        %v967 = vadd.f32 %v894, %v930
        %v968 = vadd.f32 %v895, %v929
        %v969 = vadd.f32 %v896, %v933
        %v970 = vadd.f32 %v897, %v932
        %v971 = vadd.f32 %v898, %v936
        %v972 = vadd.f32 %v899, %v935
        %v973 = vadd.f32 %v900, %v939
        %v974 = vadd.f32 %v901, %v938
        %v975 = vadd.f32 %v902, %v942
        %v976 = vadd.f32 %v903, %v941
        %v977 = vadd.f32 %v904, %v945
        %v978 = vadd.f32 %v905, %v944
        %v979 = vadd.f32 %v906, %v948
        %v980 = vadd.f32 %v907, %v947
        %981 = vst [vmem:[#allocation2] sm:$0xff] %v965
        %982 = vst [vmem:[#allocation2 + $0x8] sm:$0x7f] %v966
        %983 = vst [vmem:[#allocation2 + $0x10] sm:$0xff] %v967
        %984 = vst [vmem:[#allocation2 + $0x18] sm:$0x7f] %v968
        %985 = vst [vmem:[#allocation2 + $0x20] sm:$0xff] %v969
        %986 = vst [vmem:[#allocation2 + $0x28] sm:$0x7f] %v970
        %987 = vst [vmem:[#allocation2 + $0x30] sm:$0xff] %v971
        %988 = vst [vmem:[#allocation2 + $0x38] sm:$0x7f] %v972
        %989 = vst [vmem:[#allocation2 + $0x40] sm:$0xff] %v973
        %990 = vst [vmem:[#allocation2 + $0x48] sm:$0x7f] %v974
        %991 = vst [vmem:[#allocation2 + $0x50] sm:$0xff] %v975
        %992 = vst [vmem:[#allocation2 + $0x58] sm:$0x7f] %v976
        %993 = vst [vmem:[#allocation2 + $0x60] sm:$0xff] %v977
        %994 = vst [vmem:[#allocation2 + $0x68] sm:$0x7f] %v978
        %995 = vst [vmem:[#allocation2 + $0x70] sm:$0xff] %v979
        %996 = vst [vmem:[#allocation2 + $0x78] sm:$0x7f] %v980
        %v997 = vld [vmem:[#allocation2] sm:$0xff]
        %v998 = vld [vmem:[#allocation2 + $0x8] sm:$0xff]
        %v999 = vld [vmem:[#allocation2 + $0x10] sm:$0xff]
        %v1000 = vld [vmem:[#allocation2 + $0x18] sm:$0xff]
        %v1001 = vld [vmem:[#allocation2 + $0x20] sm:$0xff]
        %v1002 = vld [vmem:[#allocation2 + $0x28] sm:$0xff]
        %v1003 = vld [vmem:[#allocation2 + $0x30] sm:$0xff]
        %v1004 = vld [vmem:[#allocation2 + $0x38] sm:$0xff]
        %v1005 = vld [vmem:[#allocation2 + $0x40] sm:$0xff]
        %v1006 = vld [vmem:[#allocation2 + $0x48] sm:$0xff]
        %v1007 = vld [vmem:[#allocation2 + $0x50] sm:$0xff]
        %v1008 = vld [vmem:[#allocation2 + $0x58] sm:$0xff]
        %v1009 = vld [vmem:[#allocation2 + $0x60] sm:$0xff]
        %v1010 = vld [vmem:[#allocation2 + $0x68] sm:$0xff]
        %v1011 = vld [vmem:[#allocation2 + $0x70] sm:$0xff]
        %v1012 = vld [vmem:[#allocation2 + $0x78] sm:$0xff]
        %v1013 = vld [vmem:[%s2] sm:$0x1]
        %v1015 = vlaneseq
        %v1016 = vshrl.u32 %v1015, 7
        %v1017 = vsub.s32 0, %v1016
        %v1018 = vrot.slane %v1013, %v1017
        %v1020 = vmul.f32 %v997, %v1018
        %v1021 = vmul.f32 %v998, %v1018
        %v1022 = vmul.f32 %v999, %v1018
        %v1023 = vmul.f32 %v1000, %v1018
        %v1024 = vmul.f32 %v1001, %v1018
        %v1025 = vmul.f32 %v1002, %v1018
        %v1026 = vmul.f32 %v1003, %v1018
        %v1027 = vmul.f32 %v1004, %v1018
        %v1028 = vmul.f32 %v1005, %v1018
        %v1029 = vmul.f32 %v1006, %v1018
        %v1030 = vmul.f32 %v1007, %v1018
        %v1031 = vmul.f32 %v1008, %v1018
        %v1032 = vmul.f32 %v1009, %v1018
        %v1033 = vmul.f32 %v1010, %v1018
        %v1034 = vmul.f32 %v1011, %v1018
        %v1035 = vmul.f32 %v1012, %v1018
        %v1036 = vld [vmem:[%s3] sm:$0x1]
        %v1038 = vlaneseq
        %v1039 = vshrl.u32 %v1038, 7
        %v1040 = vsub.s32 0, %v1039
        %v1041 = vrot.slane %v1036, %v1040
        %v1043 = vadd.f32 %v1020, %v1041
        %v1044 = vadd.f32 %v1021, %v1041
        %v1045 = vadd.f32 %v1022, %v1041
        %v1046 = vadd.f32 %v1023, %v1041
        %v1047 = vadd.f32 %v1024, %v1041
        %v1048 = vadd.f32 %v1025, %v1041
        %v1049 = vadd.f32 %v1026, %v1041
        %v1050 = vadd.f32 %v1027, %v1041
        %v1051 = vadd.f32 %v1028, %v1041
        %v1052 = vadd.f32 %v1029, %v1041
        %v1053 = vadd.f32 %v1030, %v1041
        %v1054 = vadd.f32 %v1031, %v1041
        %v1055 = vadd.f32 %v1032, %v1041
        %v1056 = vadd.f32 %v1033, %v1041
        %v1057 = vadd.f32 %v1034, %v1041
        %v1058 = vadd.f32 %v1035, %v1041
        %v1059 = vmax.f32 %v1043, 0.0
        %v1060 = vmax.f32 %v1044, 0.0
        %v1061 = vmax.f32 %v1045, 0.0
        %v1062 = vmax.f32 %v1046, 0.0
        %v1063 = vmax.f32 %v1047, 0.0
        %v1064 = vmax.f32 %v1048, 0.0
        %v1065 = vmax.f32 %v1049, 0.0
        %v1066 = vmax.f32 %v1050, 0.0
        %v1067 = vmax.f32 %v1051, 0.0
        %v1068 = vmax.f32 %v1052, 0.0
        %v1069 = vmax.f32 %v1053, 0.0
        %v1070 = vmax.f32 %v1054, 0.0
        %v1071 = vmax.f32 %v1055, 0.0
        %v1072 = vmax.f32 %v1056, 0.0
        %v1073 = vmax.f32 %v1057, 0.0
        %v1074 = vmax.f32 %v1058, 0.0
        %v1075 = vld [vmem:[#allocation8] sm:$0xff]
        %v1076 = vld [vmem:[#allocation8 + $0x8] sm:$0xff]
        %v1077 = vld [vmem:[#allocation8 + $0x10] sm:$0xff]
        %v1078 = vld [vmem:[#allocation8 + $0x18] sm:$0xff]
        %v1079 = vld [vmem:[#allocation8 + $0x20] sm:$0xff]
        %v1080 = vld [vmem:[#allocation8 + $0x28] sm:$0xff]
        %v1081 = vld [vmem:[#allocation8 + $0x30] sm:$0xff]
        %v1082 = vld [vmem:[#allocation8 + $0x38] sm:$0xff]
        %v1083 = vld [vmem:[#allocation8 + $0x40] sm:$0xff]
        %v1084 = vld [vmem:[#allocation8 + $0x48] sm:$0xff]
        %v1085 = vld [vmem:[#allocation8 + $0x50] sm:$0xff]
        %v1086 = vld [vmem:[#allocation8 + $0x58] sm:$0xff]
        %v1087 = vld [vmem:[#allocation8 + $0x60] sm:$0xff]
        %v1088 = vld [vmem:[#allocation8 + $0x68] sm:$0xff]
        %v1089 = vld [vmem:[#allocation8 + $0x70] sm:$0xff]
        %v1090 = vld [vmem:[#allocation8 + $0x78] sm:$0xff]
        %1091 = vmatprep.subr.mxu0 0.0
        %1092 = vmatpush1.msra.mxu0 %v1090
        %1093 = vmatprep.subr.mxu0 0.0
        %1094 = vmatpush1.msra.mxu0 %v1089
        %1095 = vmatprep.subr.mxu0 0.0
        %1096 = vmatpush1.msra.mxu0 %v1088
        %1097 = vmatprep.subr.mxu0 0.0
        %1098 = vmatpush1.msra.mxu0 %v1087
        %1099 = vmatprep.subr.mxu0 0.0
        %1100 = vmatpush1.msra.mxu0 %v1086
        %1101 = vmatprep.subr.mxu0 0.0
        %1102 = vmatpush1.msra.mxu0 %v1085
        %1103 = vmatprep.subr.mxu0 0.0
        %1104 = vmatpush1.msra.mxu0 %v1084
        %1105 = vmatprep.subr.mxu0 0.0
        %1106 = vmatpush1.msra.mxu0 %v1083
        %1107 = vmatprep.subr.mxu0 0.0
        %1108 = vmatpush1.msra.mxu0 %v1082
        %1109 = vmatprep.subr.mxu0 0.0
        %1110 = vmatpush1.msra.mxu0 %v1081
        %1111 = vmatprep.subr.mxu0 0.0
        %1112 = vmatpush1.msra.mxu0 %v1080
        %1113 = vmatprep.subr.mxu0 0.0
        %1114 = vmatpush1.msra.mxu0 %v1079
        %1115 = vmatprep.subr.mxu0 0.0
        %1116 = vmatpush1.msra.mxu0 %v1078
        %1117 = vmatprep.subr.mxu0 0.0
        %1118 = vmatpush1.msra.mxu0 %v1077
        %1119 = vmatprep.subr.mxu0 0.0
        %1120 = vmatpush1.msra.mxu0 %v1076
        %1121 = vmatprep.subr.mxu0 0.0
        %1122 = vmatpush1.msra.mxu0 %v1075
        %1123 = vmatprep.subr.mxu0 0.0
        %1124 = vmatpush2.msra.mxu0 0.0
        %1125 = vmatprep.subr.mxu0 0.0
        %1126 = vmatpush2.msra.mxu0 0.0
        %1127 = vmatprep.subr.mxu0 0.0
        %1128 = vmatpush2.msra.mxu0 0.0
        %1129 = vmatprep.subr.mxu0 0.0
        %1130 = vmatpush2.msra.mxu0 0.0
        %1131 = vmatprep.subr.mxu0 0.0
        %1132 = vmatpush2.msra.mxu0 0.0
        %1133 = vmatprep.subr.mxu0 0.0
        %1134 = vmatpush2.msra.mxu0 0.0
        %1135 = vmatprep.subr.mxu0 0.0
        %1136 = vmatpush2.msra.mxu0 0.0
        %1137 = vmatprep.subr.mxu0 0.0
        %1138 = vmatpush2.msra.mxu0 0.0
        %1139 = vmatprep.subr.mxu0 0.0
        %1140 = vmatpush2.msra.mxu0 0.0
        %1141 = vmatprep.subr.mxu0 0.0
        %1142 = vmatpush2.msra.mxu0 0.0
        %1143 = vmatprep.subr.mxu0 0.0
        %1144 = vmatpush2.msra.mxu0 0.0
        %1145 = vmatprep.subr.mxu0 0.0
        %1146 = vmatpush2.msra.mxu0 0.0
        %1147 = vmatprep.subr.mxu0 0.0
        %1148 = vmatpush2.msra.mxu0 0.0
        %1149 = vmatprep.subr.mxu0 0.0
        %1150 = vmatpush2.msra.mxu0 0.0
        %1151 = vmatprep.subr.mxu0 0.0
        %1152 = vmatpush2.msra.mxu0 0.0
        %1153 = vmatprep.subr.mxu0 0.0
        %1154 = vmatpush2.msra.mxu0 0.0
        %1155 = vmatprep.mubr.f32.mxu0 0.0
        %1156 = vmatmul.mubr.f32.gmra.mxu0 %v1059
        %v1157 = vpop.f32.mrf.mxu0
        %v1158 = vadd.f32 0.0, %v1157
        %v1159 = vpop.f32.mrf.mxu0
        %1160 = vmatprep.mubr.f32.mxu0 0.0
        %1161 = vmatmul.mubr.f32.gmra.mxu0 %v1060
        %v1162 = vpop.f32.mrf.mxu0
        %v1163 = vadd.f32 0.0, %v1162
        %v1164 = vpop.f32.mrf.mxu0
        %1165 = vmatprep.mubr.f32.mxu0 0.0
        %1166 = vmatmul.mubr.f32.gmra.mxu0 %v1061
        %v1167 = vpop.f32.mrf.mxu0
        %v1168 = vadd.f32 0.0, %v1167
        %v1169 = vpop.f32.mrf.mxu0
        %1170 = vmatprep.mubr.f32.mxu0 0.0
        %1171 = vmatmul.mubr.f32.gmra.mxu0 %v1062
        %v1172 = vpop.f32.mrf.mxu0
        %v1173 = vadd.f32 0.0, %v1172
        %v1174 = vpop.f32.mrf.mxu0
        %1175 = vmatprep.mubr.f32.mxu0 0.0
        %1176 = vmatmul.mubr.f32.gmra.mxu0 %v1063
        %v1177 = vpop.f32.mrf.mxu0
        %v1178 = vadd.f32 0.0, %v1177
        %v1179 = vpop.f32.mrf.mxu0
        %1180 = vmatprep.mubr.f32.mxu0 0.0
        %1181 = vmatmul.mubr.f32.gmra.mxu0 %v1064
        %v1182 = vpop.f32.mrf.mxu0
        %v1183 = vadd.f32 0.0, %v1182
        %v1184 = vpop.f32.mrf.mxu0
        %1185 = vmatprep.mubr.f32.mxu0 0.0
        %1186 = vmatmul.mubr.f32.gmra.mxu0 %v1065
        %v1187 = vpop.f32.mrf.mxu0
        %v1188 = vadd.f32 0.0, %v1187
        %v1189 = vpop.f32.mrf.mxu0
        %1190 = vmatprep.mubr.f32.mxu0 0.0
        %1191 = vmatmul.mubr.f32.gmra.mxu0 %v1066
        %v1192 = vpop.f32.mrf.mxu0
        %v1193 = vadd.f32 0.0, %v1192
        %v1194 = vpop.f32.mrf.mxu0
        %1195 = vmatprep.mubr.f32.mxu0 0.0
        %1196 = vmatmul.mubr.f32.gmra.mxu0 %v1067
        %v1197 = vpop.f32.mrf.mxu0
        %v1198 = vadd.f32 0.0, %v1197
        %v1199 = vpop.f32.mrf.mxu0
        %1200 = vmatprep.mubr.f32.mxu0 0.0
        %1201 = vmatmul.mubr.f32.gmra.mxu0 %v1068
        %v1202 = vpop.f32.mrf.mxu0
        %v1203 = vadd.f32 0.0, %v1202
        %v1204 = vpop.f32.mrf.mxu0
        %1205 = vmatprep.mubr.f32.mxu0 0.0
        %1206 = vmatmul.mubr.f32.gmra.mxu0 %v1069
        %v1207 = vpop.f32.mrf.mxu0
        %v1208 = vadd.f32 0.0, %v1207
        %v1209 = vpop.f32.mrf.mxu0
        %1210 = vmatprep.mubr.f32.mxu0 0.0
        %1211 = vmatmul.mubr.f32.gmra.mxu0 %v1070
        %v1212 = vpop.f32.mrf.mxu0
        %v1213 = vadd.f32 0.0, %v1212
        %v1214 = vpop.f32.mrf.mxu0
        %1215 = vmatprep.mubr.f32.mxu0 0.0
        %1216 = vmatmul.mubr.f32.gmra.mxu0 %v1071
        %v1217 = vpop.f32.mrf.mxu0
        %v1218 = vadd.f32 0.0, %v1217
        %v1219 = vpop.f32.mrf.mxu0
        %1220 = vmatprep.mubr.f32.mxu0 0.0
        %1221 = vmatmul.mubr.f32.gmra.mxu0 %v1072
        %v1222 = vpop.f32.mrf.mxu0
        %v1223 = vadd.f32 0.0, %v1222
        %v1224 = vpop.f32.mrf.mxu0
        %1225 = vmatprep.mubr.f32.mxu0 0.0
        %1226 = vmatmul.mubr.f32.gmra.mxu0 %v1073
        %v1227 = vpop.f32.mrf.mxu0
        %v1228 = vadd.f32 0.0, %v1227
        %v1229 = vpop.f32.mrf.mxu0
        %1230 = vmatprep.mubr.f32.mxu0 0.0
        %1231 = vmatmul.mubr.f32.gmra.mxu0 %v1074
        %v1232 = vpop.f32.mrf.mxu0
        %v1233 = vadd.f32 0.0, %v1232
        %v1234 = vpop.f32.mrf.mxu0
        %1235 = vdwg.mxu0
        %v1236 = vld [vmem:[#allocation8 + $0x80] sm:$0xff]
        %v1237 = vld [vmem:[#allocation8 + $0x88] sm:$0xff]
        %v1238 = vld [vmem:[#allocation8 + $0x90] sm:$0xff]
        %v1239 = vld [vmem:[#allocation8 + $0x98] sm:$0xff]
        %v1240 = vld [vmem:[#allocation8 + $0xa0] sm:$0xff]
        %v1241 = vld [vmem:[#allocation8 + $0xa8] sm:$0xff]
        %v1242 = vld [vmem:[#allocation8 + $0xb0] sm:$0xff]
        %v1243 = vld [vmem:[#allocation8 + $0xb8] sm:$0xff]
        %v1244 = vld [vmem:[#allocation8 + $0xc0] sm:$0xff]
        %v1245 = vld [vmem:[#allocation8 + $0xc8] sm:$0xff]
        %v1246 = vld [vmem:[#allocation8 + $0xd0] sm:$0xff]
        %v1247 = vld [vmem:[#allocation8 + $0xd8] sm:$0xff]
        %v1248 = vld [vmem:[#allocation8 + $0xe0] sm:$0xff]
        %v1249 = vld [vmem:[#allocation8 + $0xe8] sm:$0xff]
        %v1250 = vld [vmem:[#allocation8 + $0xf0] sm:$0xff]
        %v1251 = vld [vmem:[#allocation8 + $0xf8] sm:$0xff]
        %1252 = vmatprep.subr.mxu0 0.0
        %1253 = vmatpush1.msra.mxu0 %v1251
        %1254 = vmatprep.subr.mxu0 0.0
        %1255 = vmatpush1.msra.mxu0 %v1250
        %1256 = vmatprep.subr.mxu0 0.0
        %1257 = vmatpush1.msra.mxu0 %v1249
        %1258 = vmatprep.subr.mxu0 0.0
        %1259 = vmatpush1.msra.mxu0 %v1248
        %1260 = vmatprep.subr.mxu0 0.0
        %1261 = vmatpush1.msra.mxu0 %v1247
        %1262 = vmatprep.subr.mxu0 0.0
        %1263 = vmatpush1.msra.mxu0 %v1246
        %1264 = vmatprep.subr.mxu0 0.0
        %1265 = vmatpush1.msra.mxu0 %v1245
        %1266 = vmatprep.subr.mxu0 0.0
        %1267 = vmatpush1.msra.mxu0 %v1244
        %1268 = vmatprep.subr.mxu0 0.0
        %1269 = vmatpush1.msra.mxu0 %v1243
        %1270 = vmatprep.subr.mxu0 0.0
        %1271 = vmatpush1.msra.mxu0 %v1242
        %1272 = vmatprep.subr.mxu0 0.0
        %1273 = vmatpush1.msra.mxu0 %v1241
        %1274 = vmatprep.subr.mxu0 0.0
        %1275 = vmatpush1.msra.mxu0 %v1240
        %1276 = vmatprep.subr.mxu0 0.0
        %1277 = vmatpush1.msra.mxu0 %v1239
        %1278 = vmatprep.subr.mxu0 0.0
        %1279 = vmatpush1.msra.mxu0 %v1238
        %1280 = vmatprep.subr.mxu0 0.0
        %1281 = vmatpush1.msra.mxu0 %v1237
        %1282 = vmatprep.subr.mxu0 0.0
        %1283 = vmatpush1.msra.mxu0 %v1236
        %1284 = vmatprep.subr.mxu0 0.0
        %1285 = vmatpush2.msra.mxu0 0.0
        %1286 = vmatprep.subr.mxu0 0.0
        %1287 = vmatpush2.msra.mxu0 0.0
        %1288 = vmatprep.subr.mxu0 0.0
        %1289 = vmatpush2.msra.mxu0 0.0
        %1290 = vmatprep.subr.mxu0 0.0
        %1291 = vmatpush2.msra.mxu0 0.0
        %1292 = vmatprep.subr.mxu0 0.0
        %1293 = vmatpush2.msra.mxu0 0.0
        %1294 = vmatprep.subr.mxu0 0.0
        %1295 = vmatpush2.msra.mxu0 0.0
        %1296 = vmatprep.subr.mxu0 0.0
        %1297 = vmatpush2.msra.mxu0 0.0
        %1298 = vmatprep.subr.mxu0 0.0
        %1299 = vmatpush2.msra.mxu0 0.0
        %1300 = vmatprep.subr.mxu0 0.0
        %1301 = vmatpush2.msra.mxu0 0.0
        %1302 = vmatprep.subr.mxu0 0.0
        %1303 = vmatpush2.msra.mxu0 0.0
        %1304 = vmatprep.subr.mxu0 0.0
        %1305 = vmatpush2.msra.mxu0 0.0
        %1306 = vmatprep.subr.mxu0 0.0
        %1307 = vmatpush2.msra.mxu0 0.0
        %1308 = vmatprep.subr.mxu0 0.0
        %1309 = vmatpush2.msra.mxu0 0.0
        %1310 = vmatprep.subr.mxu0 0.0
        %1311 = vmatpush2.msra.mxu0 0.0
        %1312 = vmatprep.subr.mxu0 0.0
        %1313 = vmatpush2.msra.mxu0 0.0
        %1314 = vmatprep.subr.mxu0 0.0
        %1315 = vmatpush2.msra.mxu0 0.0
        %1316 = vmatprep.mubr.f32.mxu0 0.0
        %1317 = vmatmul.mubr.f32.gmra.mxu0 %v1059
        %v1318 = vpop.f32.mrf.mxu0
        %v1319 = vadd.f32 0.0, %v1318
        %v1320 = vpop.f32.mrf.mxu0
        %1321 = vmatprep.mubr.f32.mxu0 0.0
        %1322 = vmatmul.mubr.f32.gmra.mxu0 %v1060
        %v1323 = vpop.f32.mrf.mxu0
        %v1324 = vadd.f32 0.0, %v1323
        %v1325 = vpop.f32.mrf.mxu0
        %1326 = vmatprep.mubr.f32.mxu0 0.0
        %1327 = vmatmul.mubr.f32.gmra.mxu0 %v1061
        %v1328 = vpop.f32.mrf.mxu0
        %v1329 = vadd.f32 0.0, %v1328
        %v1330 = vpop.f32.mrf.mxu0
        %1331 = vmatprep.mubr.f32.mxu0 0.0
        %1332 = vmatmul.mubr.f32.gmra.mxu0 %v1062
        %v1333 = vpop.f32.mrf.mxu0
        %v1334 = vadd.f32 0.0, %v1333
        %v1335 = vpop.f32.mrf.mxu0
        %1336 = vmatprep.mubr.f32.mxu0 0.0
        %1337 = vmatmul.mubr.f32.gmra.mxu0 %v1063
        %v1338 = vpop.f32.mrf.mxu0
        %v1339 = vadd.f32 0.0, %v1338
        %v1340 = vpop.f32.mrf.mxu0
        %1341 = vmatprep.mubr.f32.mxu0 0.0
        %1342 = vmatmul.mubr.f32.gmra.mxu0 %v1064
        %v1343 = vpop.f32.mrf.mxu0
        %v1344 = vadd.f32 0.0, %v1343
        %v1345 = vpop.f32.mrf.mxu0
        %1346 = vmatprep.mubr.f32.mxu0 0.0
        %1347 = vmatmul.mubr.f32.gmra.mxu0 %v1065
        %v1348 = vpop.f32.mrf.mxu0
        %v1349 = vadd.f32 0.0, %v1348
        %v1350 = vpop.f32.mrf.mxu0
        %1351 = vmatprep.mubr.f32.mxu0 0.0
        %1352 = vmatmul.mubr.f32.gmra.mxu0 %v1066
        %v1353 = vpop.f32.mrf.mxu0
        %v1354 = vadd.f32 0.0, %v1353
        %v1355 = vpop.f32.mrf.mxu0
        %1356 = vmatprep.mubr.f32.mxu0 0.0
        %1357 = vmatmul.mubr.f32.gmra.mxu0 %v1067
        %v1358 = vpop.f32.mrf.mxu0
        %v1359 = vadd.f32 0.0, %v1358
        %v1360 = vpop.f32.mrf.mxu0
        %1361 = vmatprep.mubr.f32.mxu0 0.0
        %1362 = vmatmul.mubr.f32.gmra.mxu0 %v1068
        %v1363 = vpop.f32.mrf.mxu0
        %v1364 = vadd.f32 0.0, %v1363
        %v1365 = vpop.f32.mrf.mxu0
        %1366 = vmatprep.mubr.f32.mxu0 0.0
        %1367 = vmatmul.mubr.f32.gmra.mxu0 %v1069
        %v1368 = vpop.f32.mrf.mxu0
        %v1369 = vadd.f32 0.0, %v1368
        %v1370 = vpop.f32.mrf.mxu0
        %1371 = vmatprep.mubr.f32.mxu0 0.0
        %1372 = vmatmul.mubr.f32.gmra.mxu0 %v1070
        %v1373 = vpop.f32.mrf.mxu0
        %v1374 = vadd.f32 0.0, %v1373
        %v1375 = vpop.f32.mrf.mxu0
        %1376 = vmatprep.mubr.f32.mxu0 0.0
        %1377 = vmatmul.mubr.f32.gmra.mxu0 %v1071
        %v1378 = vpop.f32.mrf.mxu0
        %v1379 = vadd.f32 0.0, %v1378
        %v1380 = vpop.f32.mrf.mxu0
        %1381 = vmatprep.mubr.f32.mxu0 0.0
        %1382 = vmatmul.mubr.f32.gmra.mxu0 %v1072
        %v1383 = vpop.f32.mrf.mxu0
        %v1384 = vadd.f32 0.0, %v1383
        %v1385 = vpop.f32.mrf.mxu0
        %1386 = vmatprep.mubr.f32.mxu0 0.0
        %1387 = vmatmul.mubr.f32.gmra.mxu0 %v1073
        %v1388 = vpop.f32.mrf.mxu0
        %v1389 = vadd.f32 0.0, %v1388
        %v1390 = vpop.f32.mrf.mxu0
        %1391 = vmatprep.mubr.f32.mxu0 0.0
        %1392 = vmatmul.mubr.f32.gmra.mxu0 %v1074
        %v1393 = vpop.f32.mrf.mxu0
        %v1394 = vadd.f32 0.0, %v1393
        %v1395 = vpop.f32.mrf.mxu0
        %1396 = vdwg.mxu0
        %v1397 = vld [vmem:[#allocation8 + $0x100] sm:$0xff]
        %v1398 = vld [vmem:[#allocation8 + $0x108] sm:$0xff]
        %v1399 = vld [vmem:[#allocation8 + $0x110] sm:$0xff]
        %v1400 = vld [vmem:[#allocation8 + $0x118] sm:$0xff]
        %v1401 = vld [vmem:[#allocation8 + $0x120] sm:$0xff]
        %v1402 = vld [vmem:[#allocation8 + $0x128] sm:$0xff]
        %v1403 = vld [vmem:[#allocation8 + $0x130] sm:$0xff]
        %v1404 = vld [vmem:[#allocation8 + $0x138] sm:$0xff]
        %v1405 = vld [vmem:[#allocation8 + $0x140] sm:$0xff]
        %v1406 = vld [vmem:[#allocation8 + $0x148] sm:$0xff]
        %v1407 = vld [vmem:[#allocation8 + $0x150] sm:$0xff]
        %v1408 = vld [vmem:[#allocation8 + $0x158] sm:$0xff]
        %v1409 = vld [vmem:[#allocation8 + $0x160] sm:$0xff]
        %v1410 = vld [vmem:[#allocation8 + $0x168] sm:$0xff]
        %v1411 = vld [vmem:[#allocation8 + $0x170] sm:$0xff]
        %v1412 = vld [vmem:[#allocation8 + $0x178] sm:$0xff]
        %1413 = vmatprep.subr.mxu0 0.0
        %1414 = vmatpush1.msra.mxu0 %v1412
        %1415 = vmatprep.subr.mxu0 0.0
        %1416 = vmatpush1.msra.mxu0 %v1411
        %1417 = vmatprep.subr.mxu0 0.0
        %1418 = vmatpush1.msra.mxu0 %v1410
        %1419 = vmatprep.subr.mxu0 0.0
        %1420 = vmatpush1.msra.mxu0 %v1409
        %1421 = vmatprep.subr.mxu0 0.0
        %1422 = vmatpush1.msra.mxu0 %v1408
        %1423 = vmatprep.subr.mxu0 0.0
        %1424 = vmatpush1.msra.mxu0 %v1407
        %1425 = vmatprep.subr.mxu0 0.0
        %1426 = vmatpush1.msra.mxu0 %v1406
        %1427 = vmatprep.subr.mxu0 0.0
        %1428 = vmatpush1.msra.mxu0 %v1405
        %1429 = vmatprep.subr.mxu0 0.0
        %1430 = vmatpush1.msra.mxu0 %v1404
        %1431 = vmatprep.subr.mxu0 0.0
        %1432 = vmatpush1.msra.mxu0 %v1403
        %1433 = vmatprep.subr.mxu0 0.0
        %1434 = vmatpush1.msra.mxu0 %v1402
        %1435 = vmatprep.subr.mxu0 0.0
        %1436 = vmatpush1.msra.mxu0 %v1401
        %1437 = vmatprep.subr.mxu0 0.0
        %1438 = vmatpush1.msra.mxu0 %v1400
        %1439 = vmatprep.subr.mxu0 0.0
        %1440 = vmatpush1.msra.mxu0 %v1399
        %1441 = vmatprep.subr.mxu0 0.0
        %1442 = vmatpush1.msra.mxu0 %v1398
        %1443 = vmatprep.subr.mxu0 0.0
        %1444 = vmatpush1.msra.mxu0 %v1397
        %1445 = vmatprep.subr.mxu0 0.0
        %1446 = vmatpush2.msra.mxu0 0.0
        %1447 = vmatprep.subr.mxu0 0.0
        %1448 = vmatpush2.msra.mxu0 0.0
        %1449 = vmatprep.subr.mxu0 0.0
        %1450 = vmatpush2.msra.mxu0 0.0
        %1451 = vmatprep.subr.mxu0 0.0
        %1452 = vmatpush2.msra.mxu0 0.0
        %1453 = vmatprep.subr.mxu0 0.0
        %1454 = vmatpush2.msra.mxu0 0.0
        %1455 = vmatprep.subr.mxu0 0.0
        %1456 = vmatpush2.msra.mxu0 0.0
        %1457 = vmatprep.subr.mxu0 0.0
        %1458 = vmatpush2.msra.mxu0 0.0
        %1459 = vmatprep.subr.mxu0 0.0
        %1460 = vmatpush2.msra.mxu0 0.0
        %1461 = vmatprep.subr.mxu0 0.0
        %1462 = vmatpush2.msra.mxu0 0.0
        %1463 = vmatprep.subr.mxu0 0.0
        %1464 = vmatpush2.msra.mxu0 0.0
        %1465 = vmatprep.subr.mxu0 0.0
        %1466 = vmatpush2.msra.mxu0 0.0
        %1467 = vmatprep.subr.mxu0 0.0
        %1468 = vmatpush2.msra.mxu0 0.0
        %1469 = vmatprep.subr.mxu0 0.0
        %1470 = vmatpush2.msra.mxu0 0.0
        %1471 = vmatprep.subr.mxu0 0.0
        %1472 = vmatpush2.msra.mxu0 0.0
        %1473 = vmatprep.subr.mxu0 0.0
        %1474 = vmatpush2.msra.mxu0 0.0
        %1475 = vmatprep.subr.mxu0 0.0
        %1476 = vmatpush2.msra.mxu0 0.0
        %1477 = vmatprep.mubr.f32.mxu0 0.0
        %1478 = vmatmul.mubr.f32.gmra.mxu0 %v1059
        %v1479 = vpop.f32.mrf.mxu0
        %v1480 = vadd.f32 0.0, %v1479
        %v1481 = vpop.f32.mrf.mxu0
        %1482 = vmatprep.mubr.f32.mxu0 0.0
        %1483 = vmatmul.mubr.f32.gmra.mxu0 %v1060
        %v1484 = vpop.f32.mrf.mxu0
        %v1485 = vadd.f32 0.0, %v1484
        %v1486 = vpop.f32.mrf.mxu0
        %1487 = vmatprep.mubr.f32.mxu0 0.0
        %1488 = vmatmul.mubr.f32.gmra.mxu0 %v1061
        %v1489 = vpop.f32.mrf.mxu0
        %v1490 = vadd.f32 0.0, %v1489
        %v1491 = vpop.f32.mrf.mxu0
        %1492 = vmatprep.mubr.f32.mxu0 0.0
        %1493 = vmatmul.mubr.f32.gmra.mxu0 %v1062
        %v1494 = vpop.f32.mrf.mxu0
        %v1495 = vadd.f32 0.0, %v1494
        %v1496 = vpop.f32.mrf.mxu0
        %1497 = vmatprep.mubr.f32.mxu0 0.0
        %1498 = vmatmul.mubr.f32.gmra.mxu0 %v1063
        %v1499 = vpop.f32.mrf.mxu0
        %v1500 = vadd.f32 0.0, %v1499
        %v1501 = vpop.f32.mrf.mxu0
        %1502 = vmatprep.mubr.f32.mxu0 0.0
        %1503 = vmatmul.mubr.f32.gmra.mxu0 %v1064
        %v1504 = vpop.f32.mrf.mxu0
        %v1505 = vadd.f32 0.0, %v1504
        %v1506 = vpop.f32.mrf.mxu0
        %1507 = vmatprep.mubr.f32.mxu0 0.0
        %1508 = vmatmul.mubr.f32.gmra.mxu0 %v1065
        %v1509 = vpop.f32.mrf.mxu0
        %v1510 = vadd.f32 0.0, %v1509
        %v1511 = vpop.f32.mrf.mxu0
        %1512 = vmatprep.mubr.f32.mxu0 0.0
        %1513 = vmatmul.mubr.f32.gmra.mxu0 %v1066
        %v1514 = vpop.f32.mrf.mxu0
        %v1515 = vadd.f32 0.0, %v1514
        %v1516 = vpop.f32.mrf.mxu0
        %1517 = vmatprep.mubr.f32.mxu0 0.0
        %1518 = vmatmul.mubr.f32.gmra.mxu0 %v1067
        %v1519 = vpop.f32.mrf.mxu0
        %v1520 = vadd.f32 0.0, %v1519
        %v1521 = vpop.f32.mrf.mxu0
        %1522 = vmatprep.mubr.f32.mxu0 0.0
        %1523 = vmatmul.mubr.f32.gmra.mxu0 %v1068
        %v1524 = vpop.f32.mrf.mxu0
        %v1525 = vadd.f32 0.0, %v1524
        %v1526 = vpop.f32.mrf.mxu0
        %1527 = vmatprep.mubr.f32.mxu0 0.0
        %1528 = vmatmul.mubr.f32.gmra.mxu0 %v1069
        %v1529 = vpop.f32.mrf.mxu0
        %v1530 = vadd.f32 0.0, %v1529
        %v1531 = vpop.f32.mrf.mxu0
        %1532 = vmatprep.mubr.f32.mxu0 0.0
        %1533 = vmatmul.mubr.f32.gmra.mxu0 %v1070
        %v1534 = vpop.f32.mrf.mxu0
        %v1535 = vadd.f32 0.0, %v1534
        %v1536 = vpop.f32.mrf.mxu0
        %1537 = vmatprep.mubr.f32.mxu0 0.0
        %1538 = vmatmul.mubr.f32.gmra.mxu0 %v1071
        %v1539 = vpop.f32.mrf.mxu0
        %v1540 = vadd.f32 0.0, %v1539
        %v1541 = vpop.f32.mrf.mxu0
        %1542 = vmatprep.mubr.f32.mxu0 0.0
        %1543 = vmatmul.mubr.f32.gmra.mxu0 %v1072
        %v1544 = vpop.f32.mrf.mxu0
        %v1545 = vadd.f32 0.0, %v1544
        %v1546 = vpop.f32.mrf.mxu0
        %1547 = vmatprep.mubr.f32.mxu0 0.0
        %1548 = vmatmul.mubr.f32.gmra.mxu0 %v1073
        %v1549 = vpop.f32.mrf.mxu0
        %v1550 = vadd.f32 0.0, %v1549
        %v1551 = vpop.f32.mrf.mxu0
        %1552 = vmatprep.mubr.f32.mxu0 0.0
        %1553 = vmatmul.mubr.f32.gmra.mxu0 %v1074
        %v1554 = vpop.f32.mrf.mxu0
        %v1555 = vadd.f32 0.0, %v1554
        %v1556 = vpop.f32.mrf.mxu0
        %1557 = vdwg.mxu0
        %1558 = vst [vmem:[#allocation2] sm:$0xff] %v1319
        %1559 = vst [vmem:[#allocation2 + $0x8] sm:$0xff] %v1324
        %1560 = vst [vmem:[#allocation2 + $0x10] sm:$0xff] %v1329
        %1561 = vst [vmem:[#allocation2 + $0x18] sm:$0xff] %v1334
        %1562 = vst [vmem:[#allocation2 + $0x20] sm:$0xff] %v1339
        %1563 = vst [vmem:[#allocation2 + $0x28] sm:$0xff] %v1344
        %1564 = vst [vmem:[#allocation2 + $0x30] sm:$0xff] %v1349
        %1565 = vst [vmem:[#allocation2 + $0x38] sm:$0xff] %v1354
        %1566 = vst [vmem:[#allocation2 + $0x40] sm:$0xff] %v1359
        %1567 = vst [vmem:[#allocation2 + $0x48] sm:$0xff] %v1364
        %1568 = vst [vmem:[#allocation2 + $0x50] sm:$0xff] %v1369
        %1569 = vst [vmem:[#allocation2 + $0x58] sm:$0xff] %v1374
        %1570 = vst [vmem:[#allocation2 + $0x60] sm:$0xff] %v1379
        %1571 = vst [vmem:[#allocation2 + $0x68] sm:$0xff] %v1384
        %1572 = vst [vmem:[#allocation2 + $0x70] sm:$0xff] %v1389
        %1573 = vst [vmem:[#allocation2 + $0x78] sm:$0xff] %v1394
        %v1574 = vld [vmem:[#allocation2 + $0x1] sm:$0xff]
        %v1575 = vld [vmem:[#allocation2 + $0x9] sm:$0x7f]
        %v1576 = vld [vmem:[#allocation2 + $0x11] sm:$0xff]
        %v1577 = vld [vmem:[#allocation2 + $0x19] sm:$0x7f]
        %v1578 = vld [vmem:[#allocation2 + $0x21] sm:$0xff]
        %v1579 = vld [vmem:[#allocation2 + $0x29] sm:$0x7f]
        %v1580 = vld [vmem:[#allocation2 + $0x31] sm:$0xff]
        %v1581 = vld [vmem:[#allocation2 + $0x39] sm:$0x7f]
        %v1582 = vld [vmem:[#allocation2 + $0x41] sm:$0xff]
        %v1583 = vld [vmem:[#allocation2 + $0x49] sm:$0x7f]
        %v1584 = vld [vmem:[#allocation2 + $0x51] sm:$0xff]
        %v1585 = vld [vmem:[#allocation2 + $0x59] sm:$0x7f]
        %v1586 = vld [vmem:[#allocation2 + $0x61] sm:$0xff]
        %v1587 = vld [vmem:[#allocation2 + $0x69] sm:$0x7f]
        %v1588 = vld [vmem:[#allocation2 + $0x71] sm:$0xff]
        %v1589 = vld [vmem:[#allocation2 + $0x79] sm:$0x7f]
        %v1590 = vadd.f32 %v1574, %v1158
        %v1591 = vadd.f32 %v1575, %v1163
        %v1592 = vadd.f32 %v1576, %v1168
        %v1593 = vadd.f32 %v1577, %v1173
        %v1594 = vadd.f32 %v1578, %v1178
        %v1595 = vadd.f32 %v1579, %v1183
        %v1596 = vadd.f32 %v1580, %v1188
        %v1597 = vadd.f32 %v1581, %v1193
        %v1598 = vadd.f32 %v1582, %v1198
        %v1599 = vadd.f32 %v1583, %v1203
        %v1600 = vadd.f32 %v1584, %v1208
        %v1601 = vadd.f32 %v1585, %v1213
        %v1602 = vadd.f32 %v1586, %v1218
        %v1603 = vadd.f32 %v1587, %v1223
        %v1604 = vadd.f32 %v1588, %v1228
        %v1605 = vadd.f32 %v1589, %v1233
        %1606 = vst [vmem:[#allocation2 + $0x1] sm:$0xff] %v1590
        %1607 = vst [vmem:[#allocation2 + $0x9] sm:$0x7f] %v1591
        %1608 = vst [vmem:[#allocation2 + $0x11] sm:$0xff] %v1592
        %1609 = vst [vmem:[#allocation2 + $0x19] sm:$0x7f] %v1593
        %1610 = vst [vmem:[#allocation2 + $0x21] sm:$0xff] %v1594
        %1611 = vst [vmem:[#allocation2 + $0x29] sm:$0x7f] %v1595
        %1612 = vst [vmem:[#allocation2 + $0x31] sm:$0xff] %v1596
        %1613 = vst [vmem:[#allocation2 + $0x39] sm:$0x7f] %v1597
        %1614 = vst [vmem:[#allocation2 + $0x41] sm:$0xff] %v1598
        %1615 = vst [vmem:[#allocation2 + $0x49] sm:$0x7f] %v1599
        %1616 = vst [vmem:[#allocation2 + $0x51] sm:$0xff] %v1600
        %1617 = vst [vmem:[#allocation2 + $0x59] sm:$0x7f] %v1601
        %1618 = vst [vmem:[#allocation2 + $0x61] sm:$0xff] %v1602
        %1619 = vst [vmem:[#allocation2 + $0x69] sm:$0x7f] %v1603
        %1620 = vst [vmem:[#allocation2 + $0x71] sm:$0xff] %v1604
        %1621 = vst [vmem:[#allocation2 + $0x79] sm:$0x7f] %v1605
        %v1622 = vld [vmem:[#allocation2] sm:$0xff]
        %v1623 = vld [vmem:[#allocation2 + $0x8] sm:$0x7f]
        %v1624 = vld [vmem:[#allocation2 + $0x10] sm:$0xff]
        %v1625 = vld [vmem:[#allocation2 + $0x18] sm:$0x7f]
        %v1626 = vld [vmem:[#allocation2 + $0x20] sm:$0xff]
        %v1627 = vld [vmem:[#allocation2 + $0x28] sm:$0x7f]
        %v1628 = vld [vmem:[#allocation2 + $0x30] sm:$0xff]
        %v1629 = vld [vmem:[#allocation2 + $0x38] sm:$0x7f]
        %v1630 = vld [vmem:[#allocation2 + $0x40] sm:$0xff]
        %v1631 = vld [vmem:[#allocation2 + $0x48] sm:$0x7f]
        %v1632 = vld [vmem:[#allocation2 + $0x50] sm:$0xff]
        %v1633 = vld [vmem:[#allocation2 + $0x58] sm:$0x7f]
        %v1634 = vld [vmem:[#allocation2 + $0x60] sm:$0xff]
        %v1635 = vld [vmem:[#allocation2 + $0x68] sm:$0x7f]
        %v1636 = vld [vmem:[#allocation2 + $0x70] sm:$0xff]
        %v1637 = vld [vmem:[#allocation2 + $0x78] sm:$0x7f]
        %v1654 = vrot.slane %v1480, 1
        %v1655 = vrot.slane %v1485, 1
        %v1656 = vsel %vm924, %v1654, %v1655
        %v1657 = vrot.slane %v1490, 1
        %v1658 = vrot.slane %v1495, 1
        %v1659 = vsel %vm924, %v1657, %v1658
        %v1660 = vrot.slane %v1500, 1
        %v1661 = vrot.slane %v1505, 1
        %v1662 = vsel %vm924, %v1660, %v1661
        %v1663 = vrot.slane %v1510, 1
        %v1664 = vrot.slane %v1515, 1
        %v1665 = vsel %vm924, %v1663, %v1664
        %v1666 = vrot.slane %v1520, 1
        %v1667 = vrot.slane %v1525, 1
        %v1668 = vsel %vm924, %v1666, %v1667
        %v1669 = vrot.slane %v1530, 1
        %v1670 = vrot.slane %v1535, 1
        %v1671 = vsel %vm924, %v1669, %v1670
        %v1672 = vrot.slane %v1540, 1
        %v1673 = vrot.slane %v1545, 1
        %v1674 = vsel %vm924, %v1672, %v1673
        %v1675 = vrot.slane %v1550, 1
        %v1676 = vrot.slane %v1555, 1
        %v1677 = vsel %vm924, %v1675, %v1676
        %v1694 = vadd.f32 %v1622, %v1656
        %v1695 = vadd.f32 %v1623, %v1655
        %v1696 = vadd.f32 %v1624, %v1659
        %v1697 = vadd.f32 %v1625, %v1658
        %v1698 = vadd.f32 %v1626, %v1662
        %v1699 = vadd.f32 %v1627, %v1661
        %v1700 = vadd.f32 %v1628, %v1665
        %v1701 = vadd.f32 %v1629, %v1664
        %v1702 = vadd.f32 %v1630, %v1668
        %v1703 = vadd.f32 %v1631, %v1667
        %v1704 = vadd.f32 %v1632, %v1671
        %v1705 = vadd.f32 %v1633, %v1670
        %v1706 = vadd.f32 %v1634, %v1674
        %v1707 = vadd.f32 %v1635, %v1673
        %v1708 = vadd.f32 %v1636, %v1677
        %v1709 = vadd.f32 %v1637, %v1676
        %1710 = vst [vmem:[#allocation2] sm:$0xff] %v1694
        %1711 = vst [vmem:[#allocation2 + $0x8] sm:$0x7f] %v1695
        %1712 = vst [vmem:[#allocation2 + $0x10] sm:$0xff] %v1696
        %1713 = vst [vmem:[#allocation2 + $0x18] sm:$0x7f] %v1697
        %1714 = vst [vmem:[#allocation2 + $0x20] sm:$0xff] %v1698
        %1715 = vst [vmem:[#allocation2 + $0x28] sm:$0x7f] %v1699
        %1716 = vst [vmem:[#allocation2 + $0x30] sm:$0xff] %v1700
        %1717 = vst [vmem:[#allocation2 + $0x38] sm:$0x7f] %v1701
        %1718 = vst [vmem:[#allocation2 + $0x40] sm:$0xff] %v1702
        %1719 = vst [vmem:[#allocation2 + $0x48] sm:$0x7f] %v1703
        %1720 = vst [vmem:[#allocation2 + $0x50] sm:$0xff] %v1704
        %1721 = vst [vmem:[#allocation2 + $0x58] sm:$0x7f] %v1705
        %1722 = vst [vmem:[#allocation2 + $0x60] sm:$0xff] %v1706
        %1723 = vst [vmem:[#allocation2 + $0x68] sm:$0x7f] %v1707
        %1724 = vst [vmem:[#allocation2 + $0x70] sm:$0xff] %v1708
        %1725 = vst [vmem:[#allocation2 + $0x78] sm:$0x7f] %v1709
        %v1726 = vld [vmem:[#allocation2] sm:$0xff]
        %v1727 = vld [vmem:[#allocation2 + $0x8] sm:$0xff]
        %v1728 = vld [vmem:[#allocation2 + $0x10] sm:$0xff]
        %v1729 = vld [vmem:[#allocation2 + $0x18] sm:$0xff]
        %v1730 = vld [vmem:[#allocation2 + $0x20] sm:$0xff]
        %v1731 = vld [vmem:[#allocation2 + $0x28] sm:$0xff]
        %v1732 = vld [vmem:[#allocation2 + $0x30] sm:$0xff]
        %v1733 = vld [vmem:[#allocation2 + $0x38] sm:$0xff]
        %v1734 = vld [vmem:[#allocation2 + $0x40] sm:$0xff]
        %v1735 = vld [vmem:[#allocation2 + $0x48] sm:$0xff]
        %v1736 = vld [vmem:[#allocation2 + $0x50] sm:$0xff]
        %v1737 = vld [vmem:[#allocation2 + $0x58] sm:$0xff]
        %v1738 = vld [vmem:[#allocation2 + $0x60] sm:$0xff]
        %v1739 = vld [vmem:[#allocation2 + $0x68] sm:$0xff]
        %v1740 = vld [vmem:[#allocation2 + $0x70] sm:$0xff]
        %v1741 = vld [vmem:[#allocation2 + $0x78] sm:$0xff]
        %v1742 = vld [vmem:[%s5] sm:$0x1]
        %v1744 = vlaneseq
        %v1745 = vshrl.u32 %v1744, 7
        %v1746 = vsub.s32 0, %v1745
        %v1747 = vrot.slane %v1742, %v1746
        %v1749 = vmul.f32 %v1726, %v1747
        %v1750 = vmul.f32 %v1727, %v1747
        %v1751 = vmul.f32 %v1728, %v1747
        %v1752 = vmul.f32 %v1729, %v1747
        %v1753 = vmul.f32 %v1730, %v1747
        %v1754 = vmul.f32 %v1731, %v1747
        %v1755 = vmul.f32 %v1732, %v1747
        %v1756 = vmul.f32 %v1733, %v1747
        %v1757 = vmul.f32 %v1734, %v1747
        %v1758 = vmul.f32 %v1735, %v1747
        %v1759 = vmul.f32 %v1736, %v1747
        %v1760 = vmul.f32 %v1737, %v1747
        %v1761 = vmul.f32 %v1738, %v1747
        %v1762 = vmul.f32 %v1739, %v1747
        %v1763 = vmul.f32 %v1740, %v1747
        %v1764 = vmul.f32 %v1741, %v1747
        %v1765 = vld [vmem:[%s6] sm:$0x1]
        %v1767 = vlaneseq
        %v1768 = vshrl.u32 %v1767, 7
        %v1769 = vsub.s32 0, %v1768
        %v1770 = vrot.slane %v1765, %v1769
        %v1772 = vadd.f32 %v1749, %v1770
        %v1773 = vadd.f32 %v1750, %v1770
        %v1774 = vadd.f32 %v1751, %v1770
        %v1775 = vadd.f32 %v1752, %v1770
        %v1776 = vadd.f32 %v1753, %v1770
        %v1777 = vadd.f32 %v1754, %v1770
        %v1778 = vadd.f32 %v1755, %v1770
        %v1779 = vadd.f32 %v1756, %v1770
        %v1780 = vadd.f32 %v1757, %v1770
        %v1781 = vadd.f32 %v1758, %v1770
        %v1782 = vadd.f32 %v1759, %v1770
        %v1783 = vadd.f32 %v1760, %v1770
        %v1784 = vadd.f32 %v1761, %v1770
        %v1785 = vadd.f32 %v1762, %v1770
        %v1786 = vadd.f32 %v1763, %v1770
        %v1787 = vadd.f32 %v1764, %v1770
        %v1788 = vadd.f32 %v1772, %v329
        %v1789 = vadd.f32 %v1773, %v330
        %v1790 = vadd.f32 %v1774, %v331
        %v1791 = vadd.f32 %v1775, %v332
        %v1792 = vadd.f32 %v1776, %v333
        %v1793 = vadd.f32 %v1777, %v334
        %v1794 = vadd.f32 %v1778, %v335
        %v1795 = vadd.f32 %v1779, %v336
        %v1796 = vadd.f32 %v1780, %v337
        %v1797 = vadd.f32 %v1781, %v338
        %v1798 = vadd.f32 %v1782, %v339
        %v1799 = vadd.f32 %v1783, %v340
        %v1800 = vadd.f32 %v1784, %v341
        %v1801 = vadd.f32 %v1785, %v342
        %v1802 = vadd.f32 %v1786, %v343
        %v1803 = vadd.f32 %v1787, %v344
        %v1804 = vmax.f32 %v1788, 0.0
        %v1805 = vmax.f32 %v1789, 0.0
        %v1806 = vmax.f32 %v1790, 0.0
        %v1807 = vmax.f32 %v1791, 0.0
        %v1808 = vmax.f32 %v1792, 0.0
        %v1809 = vmax.f32 %v1793, 0.0
        %v1810 = vmax.f32 %v1794, 0.0
        %v1811 = vmax.f32 %v1795, 0.0
        %v1812 = vmax.f32 %v1796, 0.0
        %v1813 = vmax.f32 %v1797, 0.0
        %v1814 = vmax.f32 %v1798, 0.0
        %v1815 = vmax.f32 %v1799, 0.0
        %v1816 = vmax.f32 %v1800, 0.0
        %v1817 = vmax.f32 %v1801, 0.0
        %v1818 = vmax.f32 %v1802, 0.0
        %v1819 = vmax.f32 %v1803, 0.0
        %1820 = vst [vmem:[%s326] sm:$0xff] %v1804
        %1821 = vst [vmem:[%s326 + $0x8] sm:$0xff] %v1805
        %1822 = vst [vmem:[%s326 + $0x10] sm:$0xff] %v1806
        %1823 = vst [vmem:[%s326 + $0x18] sm:$0xff] %v1807
        %1824 = vst [vmem:[%s326 + $0x20] sm:$0xff] %v1808
        %1825 = vst [vmem:[%s326 + $0x28] sm:$0xff] %v1809
        %1826 = vst [vmem:[%s326 + $0x30] sm:$0xff] %v1810
        %1827 = vst [vmem:[%s326 + $0x38] sm:$0xff] %v1811
        %1828 = vst [vmem:[%s326 + $0x40] sm:$0xff] %v1812
        %1829 = vst [vmem:[%s326 + $0x48] sm:$0xff] %v1813
        %1830 = vst [vmem:[%s326 + $0x50] sm:$0xff] %v1814
        %1831 = vst [vmem:[%s326 + $0x58] sm:$0xff] %v1815
        %1832 = vst [vmem:[%s326 + $0x60] sm:$0xff] %v1816
        %1833 = vst [vmem:[%s326 + $0x68] sm:$0xff] %v1817
        %1834 = vst [vmem:[%s326 + $0x70] sm:$0xff] %v1818
        %1835 = vst [vmem:[%s326 + $0x78] sm:$0xff] %v1819
        %s1836 = sand.u32 %s185, 1
        %s1837 = scalar_lea.sflag [#allocation5], %s1836
        %s1838 = sand.u32 %s185, 1
        %s1839 = smul.addr %s1838, 128
        %s1840 = scalar_lea.vmem [#allocation9], %s1839
        // Predicated region
        $region61: #{tpu_custom_call.1} parent=47 // pred_check
          %p1841 = pneg %p195
        $region62: #{tpu_custom_call.1} parent=47 // pred_check_branch
          %1843 = sbr.rel (%p1841) target = $region64
        $region63: #{tpu_custom_call.1} parent=47 // pred_region
          %s1844 = smul.u32 8, %s25
          %s1846 = ssub.s32 2048, 2048
          %1847 = vsyncadd %s1837, %s1846
          %s1848 = smul.addr %s1844, 2
          %s1849 = smul.addr %s1848, 128
          %s1850 = scalar_lea.hbm %s7, %s1849
          %s1851 = sshll.u32 %s1840, 4
          %s1852 = int_to_ptr.vmem [resolvable:$true] %s1851
          %1857 = dma.vmem_to_hbm [thread:$0]  %s1852, 2048, %s1850, %s1837, 128, 128, 8
        $region64: #{tpu_custom_call.1} parent=47 // pred_fallthru
          _
      $region48: #{tpu_custom_call.1} parent=5 // pred_fallthru
        _
      %p1858 = scmp.le.s32.totalorder 2, %s20
      // Predicated region
      $region65: #{tpu_custom_call.1} parent=5 // pred_check
        %p1859 = pneg %p1858
      $region66: #{tpu_custom_call.1} parent=5 // pred_check_branch
        %1861 = sbr.rel (%p1859) target = $region68
      $region67: #{tpu_custom_call.1} parent=5 // pred_region
        %s1862 = ssub.s32 %s20, 2
        // Predicated region
        $region69: #{tpu_custom_call.1} parent=67 // pred_check
          %p1863 = pneg %p201
        $region70: #{tpu_custom_call.1} parent=67 // pred_check_branch
          %1865 = sbr.rel (%p1863) target = $region72
        $region71: #{tpu_custom_call.1} parent=67 // pred_region
          %s1866 = sand.u32 %s186, 1
          %s1867 = scalar_lea.sflag [#allocation5], %s1866
          %s1868 = sand.u32 %s186, 1
          %s1869 = smul.addr %s1868, 128
          %s1870 = scalar_lea.vmem [#allocation9], %s1869
          %1871 = dma.done %s1867, 2048
        $region72: #{tpu_custom_call.1} parent=67 // pred_fallthru
          _
      $region68: #{tpu_custom_call.1} parent=5 // pred_fallthru
        _
    $region6: #{tpu_custom_call.1} parent=1 // loop_footer
      %s24 = sadd.s32 1, %s20
    $region7: #{tpu_custom_call.1} parent=1 // loop_footer_branch
      %19 = sbr.rel target = $region3
    $region8: #{tpu_custom_call.1} parent=1 // loop_exit
      _
    %1872 = vsyncpa [#allocation4], 1
    %s1873 = scalar_lea.sflag [#allocation4], 1
    %1874 = vsyncpa %s1873, 1
    %1875 = vsyncpa [#allocation7], 1
    %1876 = vsyncpa [#allocation5], 1
    %s1877 = scalar_lea.sflag [#allocation5], 1
    %1878 = vsyncpa %s1877, 1

</llo_original>
